<compile_context>
chip_gen: v5e
topology: v5e:2x2
jax: 0.10.0
libtpu: 0.0.40
codegen_flags: <defaults>
</compile_context>

<pallas_src>
import functools

import jax
import jax.numpy as jnp
from jax.experimental import pallas as pl
from jax.experimental.pallas import tpu as pltpu


def _dsconv_kernel(x_ref, w_ref, b_ref, out_ref, *, K, pad, tile_b, L, Lp):
    """One block of tile_b batch elements, NCL layout (length on lanes).

    x_ref  : (tile_b, Cin, Lp)  activations (model dtype)
    w_ref  : (K, Cout, Cin)     fused weights  W_t[o,c] = wpw[o,c] * wdw[c,t]
    b_ref  : (Cout, 1)          fused bias     wpw @ b_dw + b_pw   (f32)
    out_ref: (tile_b, Cout, Lp)
    """
    mm_dtype = w_ref.dtype
    bias = b_ref[...]                                  # (Cout, 1) f32
    offs = [t - pad for t in range(K)]

    # Static (Python) decision: a tap only needs a lane mask when the right
    # zero-padding (Lp - L columns) is too short to absorb the circular wrap
    # of pltpu.roll for that tap's offset.
    def _needs_mask(off):
        if off == 0:
            return False
        if off < 0:
            return (Lp - L) < -off
        return Lp < L + off

    any_mask = any(_needs_mask(o) for o in offs)
    lane = (jax.lax.broadcasted_iota(jnp.int32, (1, Lp), 1) if any_mask else None)

    for b in range(tile_b):                            # small & static -> unrolled
        xb = x_ref[b]                                  # (Cin, Lp)
        if xb.dtype != mm_dtype:
            xb = xb.astype(mm_dtype)                   # (v5e bf16-operand option)

        # Center tap initializes the accumulator: no zero-fill, no roll, no mask.
        acc = jnp.dot(w_ref[pad], xb, preferred_element_type=jnp.float32)  # (Cout, Lp) f32

        for t in range(K):                             # K small & static -> unrolled
            off = offs[t]
            if off == 0:
                continue
            # pltpu.roll (jnp.roll semantics): y[..., l] = x[..., (l - shift) % Lp]
            # shift = (-off) % Lp  =>  y[..., l] = x[..., (l + off) % Lp]
            tap = pltpu.roll(xb, shift=(-off) % Lp, axis=1)
            if _needs_mask(off):
                cond = (lane >= -off) if off < 0 else (lane < Lp - off)
                tap = jnp.where(cond, tap, jnp.zeros_like(tap))
            # Consecutive accumulations into a single f32 result; on v7x Mosaic
            # can keep this in the MXU result buffer (in-place accumulate).
            acc = acc + jnp.dot(w_ref[t], tap, preferred_element_type=jnp.float32)

        out_ref[b] = (acc + bias).astype(out_ref.dtype)


def _pick_tile_b(B, per_b_bytes, fixed_bytes, budget, *, max_tile=8, min_steps=4):
    """Largest batch-block that fits the VMEM budget while keeping >= min_steps
    grid steps (>= 2 pipelined steps per core on a v7x megacore)."""
    cands = [tb for tb in range(min(B, max_tile), 0, -1) if B % tb == 0]
    fitting = [tb for tb in cands if fixed_bytes + tb * per_b_bytes <= budget]
    if not fitting:
        return 1
    for want_steps in (min_steps, 2, 1):
        for tb in fitting:
            if B // tb >= want_steps:
                return tb
    return fitting[-1]


def depthwise_separable_conv1d(x_ncl, w_dw, b_dw, w_pw, b_pw, *, use_bf16_mxu=None):
    """x_ncl: (B, Cin, L)  -- PyTorch NCL layout.
    w_dw: (Cin, 1, K) depthwise weight (torch layout),   b_dw: (Cin,)
    w_pw: (Cout, Cin, 1) pointwise weight (torch layout), b_pw: (Cout,)
    returns (B, Cout, L)
    """
    B, Cin, L = x_ncl.shape
    K = w_dw.shape[-1]
    assert K % 2 == 1, "odd kernel size expected ('same' padding, QANet uses k=7)"
    Cout = w_pw.shape[0]
    pad = K // 2

    # Lane-dense length: pad L up to a multiple of 128 only when needed.  We do
    # NOT force Lp >= L + pad: taps whose roll-wrap is not absorbed by the
    # right zero-pad are masked in-kernel (one cheap select) instead of paying
    # an extra full HBM copy of the activations.
    Lp = max(128, ((L + 127) // 128) * 128)
    x_in = x_ncl if Lp == L else jnp.pad(x_ncl, ((0, 0), (0, 0), (0, Lp - L)))

    if use_bf16_mxu is None:
        use_bf16_mxu = (x_ncl.dtype == jnp.bfloat16)
    mm_dtype = jnp.bfloat16 if use_bf16_mxu else jnp.float32

    # Fuse depthwise into pointwise: K (Cout, Cin) matrices + one fused bias.
    #   W_t[o, c] = wpw[o, c] * wdw[c, t]        b_fused = wpw @ b_dw + b_pw
    wdw = w_dw[:, 0, :].astype(jnp.float32)                      # (Cin, K)
    wpw = w_pw[:, :, 0].astype(jnp.float32)                      # (Cout, Cin)
    w_fused = (wpw[None, :, :] * wdw.T[:, None, :]).astype(mm_dtype)   # (K, Cout, Cin)
    b_fused = (jnp.dot(wpw, b_dw.astype(jnp.float32),
                       precision=jax.lax.Precision.HIGHEST)
               + b_pw.astype(jnp.float32)).reshape(Cout, 1)      # (Cout, 1) f32

    # VMEM budgeting (per grid step) -> batch-block size + explicit vmem limit.
    x_isize = jnp.dtype(x_in.dtype).itemsize
    o_isize = x_isize
    mm_isize = jnp.dtype(mm_dtype).itemsize
    per_b = (2 * Cin * Lp * x_isize        # double-buffered input block
             + 2 * Cout * Lp * o_isize     # double-buffered output block
             + 2 * Cin * Lp * mm_isize     # xb + rolled tap temporaries
             + Cout * Lp * 4)              # f32 accumulator
    fixed = 3 * K * Cout * Cin * mm_isize + 8 * Cout + (1 << 20)   # weights + bias + slack
    try:
        vmem_budget = min(32 << 20, pltpu.get_tpu_info().vmem_capacity_bytes // 2)
    except Exception:
        vmem_budget = 32 << 20             # safe on v5e / v6e / v7x

    tile_b = _pick_tile_b(B, per_b, fixed, vmem_budget)
    grid = (B // tile_b,)

    kernel = functools.partial(_dsconv_kernel, K=K, pad=pad, tile_b=tile_b, L=L, Lp=Lp)

    cost = pl.CostEstimate(
        flops=2 * B * Lp * Cout * Cin * K + 2 * B * Cout * Lp,
        transcendentals=0,
        bytes_accessed=(x_isize * B * Cin * Lp + o_isize * B * Cout * Lp
                        + mm_isize * K * Cout * Cin + 4 * Cout),
    )

    out = pl.pallas_call(
        kernel,
        out_shape=jax.ShapeDtypeStruct((B, Cout, Lp), x_ncl.dtype),
        grid_spec=pltpu.PrefetchScalarGridSpec(
            num_scalar_prefetch=0,
            grid=grid,
            in_specs=[
                pl.BlockSpec((tile_b, Cin, Lp), lambda i: (i, 0, 0)),
                pl.BlockSpec((K, Cout, Cin), lambda i: (0, 0, 0)),
                pl.BlockSpec((Cout, 1), lambda i: (0, 0)),
            ],
            out_specs=pl.BlockSpec((tile_b, Cout, Lp), lambda i: (i, 0, 0)),
        ),
        compiler_params=pltpu.CompilerParams(
            dimension_semantics=("parallel",),
            vmem_limit_bytes=vmem_budget,
        ),
        cost_estimate=cost,
    )(x_in, w_fused, b_fused)

    # When L is not lane-aligned we must trim back to the module's output
    # length; unavoidable to preserve the PyTorch output shape.
    return out if Lp == L else out[:, :, :L]


def _reference(x_ncl, w_dw, b_dw, w_pw, b_pw):
    """Pure-JAX reference matching torch Conv1d semantics (f32, HIGHEST matmul)."""
    B, Cin, L = x_ncl.shape
    K = w_dw.shape[-1]
    pad = K // 2
    xp = jnp.pad(x_ncl.astype(jnp.float32), ((0, 0), (0, 0), (pad, pad)))
    dw = jnp.zeros((B, Cin, L), jnp.float32)
    for t in range(K):
        dw = dw + xp[:, :, t:t + L] * w_dw[:, 0, t].astype(jnp.float32)[None, :, None]
    dw = dw + b_dw.astype(jnp.float32)[None, :, None]
    out = jnp.einsum('bcl,oc->bol', dw, w_pw[:, :, 0].astype(jnp.float32),
                     precision=jax.lax.Precision.HIGHEST)
    out = out + b_pw.astype(jnp.float32)[None, :, None]
    return out.astype(x_ncl.dtype)


def _run_case(key, B, Cin, Cout, L, K, dtype):
    k_x, k_dw, k_pw = jax.random.split(key, 3)
    x = jax.random.normal(k_x, (B, Cin, L), dtype=jnp.float32).astype(dtype)
    # Deterministic synthetic parameters (kaiming-normal-ish scaling; the
    # PyTorch module initializes both biases to zero).
    w_dw = jax.random.normal(k_dw, (Cin, 1, K), dtype=jnp.float32) * (2.0 / K) ** 0.5
    b_dw = jnp.zeros((Cin,), jnp.float32)
    w_pw = jax.random.normal(k_pw, (Cout, Cin, 1), dtype=jnp.float32) * (2.0 / Cin) ** 0.5
    b_pw = jnp.zeros((Cout,), jnp.float32)

    out = jax.block_until_ready(depthwise_separable_conv1d(x, w_dw, b_dw, w_pw, b_pw))
    ref = _reference(x, w_dw, b_dw, w_pw, b_pw)
    assert out.shape == (B, Cout, L), out.shape
    # Loose-ish tolerance: the in-kernel MXU matmuls run at default precision
    # while the reference runs at Precision.HIGHEST; structural bugs would
    # produce O(1) errors, far above this bound.
    max_err = float(jnp.max(jnp.abs(out.astype(jnp.float32) - ref.astype(jnp.float32))))
    assert jnp.allclose(out.astype(jnp.float32), ref.astype(jnp.float32),
                        atol=3e-2, rtol=3e-2), max_err


if __name__ == "__main__":
    key = jax.random.PRNGKey(0)
    k1, k2 = jax.random.split(key)

    # QANet-like sizes: d_model = 128 channels, seq length 128, kernel 7.
    # (L % 128 == 0 -> exercises the masked-tap path, no wrapper pad/slice.)
    _run_case(k1, B=4, Cin=128, Cout=128, L=128, K=7, dtype=jnp.float32)

    # Non-aligned length -> exercises the lane-pad + mask-free roll path.
    _run_case(k2, B=2, Cin=64, Cout=128, L=192, K=7, dtype=jnp.float32)

    print("KERNEL_OK")
</pallas_src>

<mosaic_0001>
module attributes {stable_mosaic.version = 11 : i64} {
  func.func @_dsconv_kernel(%arg0: i32, %arg1: memref<1x128x128xf32, #tpu.memory_space<vmem>>, %arg2: memref<7x128x128xf32, #tpu.memory_space<vmem>>, %arg3: memref<128x1xf32, #tpu.memory_space<vmem>>, %arg4: memref<1x128x128xf32, #tpu.memory_space<vmem>>) attributes {dimension_semantics = [#tpu.dimension_semantics<parallel>], iteration_bounds = array<i64: 4>, scalar_prefetch = 0 : i64, scratch_operands = 0 : i64, tpu.core_type = #tpu.core_type<tc>, window_params = [{transform_indices = @transform_0, window_bounds = array<i64: 1, 128, 128>}, {pipeline_mode = #tpu.pipeline_mode<synchronous>, transform_indices = @transform_1, window_bounds = array<i64: 7, 128, 128>}, {pipeline_mode = #tpu.pipeline_mode<synchronous>, transform_indices = @transform_2, window_bounds = array<i64: 128, 1>}, {transform_indices = @transform_3, window_bounds = array<i64: 1, 128, 128>}]} {
    %c0 = arith.constant 0 : index
    %c0_0 = arith.constant 0 : index
    %0 = vector.load %arg3[%c0, %c0_0] : memref<128x1xf32, #tpu.memory_space<vmem>>, vector<128x1xf32>
    %1 = tpu.iota {dimensions = array<i32: 1>} : vector<1x128xi32>
    %c0_1 = arith.constant 0 : index
    %c0_2 = arith.constant 0 : index
    %c0_3 = arith.constant 0 : index
    %2 = vector.load %arg1[%c0_1, %c0_2, %c0_3] : memref<1x128x128xf32, #tpu.memory_space<vmem>>, vector<1x128x128xf32>
    %3 = vector.shape_cast %2 : vector<1x128x128xf32> to vector<128x128xf32>
    %c3 = arith.constant 3 : index
    %c0_4 = arith.constant 0 : index
    %c0_5 = arith.constant 0 : index
    %4 = vector.load %arg2[%c3, %c0_4, %c0_5] : memref<7x128x128xf32, #tpu.memory_space<vmem>>, vector<1x128x128xf32>
    %5 = vector.shape_cast %4 : vector<1x128x128xf32> to vector<128x128xf32>
    %cst = arith.constant dense<0.000000e+00> : vector<128x128xf32>
    %6 = tpu.matmul %5, %3, %cst {dimension_numbers = #tpu.dot_dimension_numbers<[1], [0], [0], [1], [0, 0, 1, 1], [], []>} : vector<128x128xf32>, vector<128x128xf32>, vector<128x128xf32> -> vector<128x128xf32>
    %c3_i32 = arith.constant 3 : i32
    %7 = tpu.dynamic_rotate %3 by %c3_i32 dim 1 : vector<128x128xf32>, i32 -> vector<128x128xf32>
    %c3_i32_6 = arith.constant 3 : i32
    %8 = vector.broadcast %c3_i32_6 : i32 to vector<1x128xi32>
    %9 = arith.cmpi sge, %1, %8 : vector<1x128xi32>
    %cst_7 = arith.constant 0.000000e+00 : f32
    %10 = vector.broadcast %cst_7 : f32 to vector<128x128xf32>
    %11 = vector.shape_cast %9 : vector<1x128xi1> to vector<1x128xi1>
    %12 = vector.broadcast %11 : vector<1x128xi1> to vector<128x128xi1>
    %13 = arith.select %12, %7, %10 : vector<128x128xi1>, vector<128x128xf32>
    %c0_8 = arith.constant 0 : index
    %c0_9 = arith.constant 0 : index
    %c0_10 = arith.constant 0 : index
    %14 = vector.load %arg2[%c0_8, %c0_9, %c0_10] : memref<7x128x128xf32, #tpu.memory_space<vmem>>, vector<1x128x128xf32>
    %15 = vector.shape_cast %14 : vector<1x128x128xf32> to vector<128x128xf32>
    %cst_11 = arith.constant dense<0.000000e+00> : vector<128x128xf32>
    %16 = tpu.matmul %15, %13, %cst_11 {dimension_numbers = #tpu.dot_dimension_numbers<[1], [0], [0], [1], [0, 0, 1, 1], [], []>} : vector<128x128xf32>, vector<128x128xf32>, vector<128x128xf32> -> vector<128x128xf32>
    %17 = arith.addf %6, %16 : vector<128x128xf32>
    %c2_i32 = arith.constant 2 : i32
    %18 = tpu.dynamic_rotate %3 by %c2_i32 dim 1 : vector<128x128xf32>, i32 -> vector<128x128xf32>
    %c2_i32_12 = arith.constant 2 : i32
    %19 = vector.broadcast %c2_i32_12 : i32 to vector<1x128xi32>
    %20 = arith.cmpi sge, %1, %19 : vector<1x128xi32>
    %cst_13 = arith.constant 0.000000e+00 : f32
    %21 = vector.broadcast %cst_13 : f32 to vector<128x128xf32>
    %22 = vector.shape_cast %20 : vector<1x128xi1> to vector<1x128xi1>
    %23 = vector.broadcast %22 : vector<1x128xi1> to vector<128x128xi1>
    %24 = arith.select %23, %18, %21 : vector<128x128xi1>, vector<128x128xf32>
    %c1 = arith.constant 1 : index
    %c0_14 = arith.constant 0 : index
    %c0_15 = arith.constant 0 : index
    %25 = vector.load %arg2[%c1, %c0_14, %c0_15] : memref<7x128x128xf32, #tpu.memory_space<vmem>>, vector<1x128x128xf32>
    %26 = vector.shape_cast %25 : vector<1x128x128xf32> to vector<128x128xf32>
    %cst_16 = arith.constant dense<0.000000e+00> : vector<128x128xf32>
    %27 = tpu.matmul %26, %24, %cst_16 {dimension_numbers = #tpu.dot_dimension_numbers<[1], [0], [0], [1], [0, 0, 1, 1], [], []>} : vector<128x128xf32>, vector<128x128xf32>, vector<128x128xf32> -> vector<128x128xf32>
    %28 = arith.addf %17, %27 : vector<128x128xf32>
    %c1_i32 = arith.constant 1 : i32
    %29 = tpu.dynamic_rotate %3 by %c1_i32 dim 1 : vector<128x128xf32>, i32 -> vector<128x128xf32>
    %c1_i32_17 = arith.constant 1 : i32
    %30 = vector.broadcast %c1_i32_17 : i32 to vector<1x128xi32>
    %31 = arith.cmpi sge, %1, %30 : vector<1x128xi32>
    %cst_18 = arith.constant 0.000000e+00 : f32
    %32 = vector.broadcast %cst_18 : f32 to vector<128x128xf32>
    %33 = vector.shape_cast %31 : vector<1x128xi1> to vector<1x128xi1>
    %34 = vector.broadcast %33 : vector<1x128xi1> to vector<128x128xi1>
    %35 = arith.select %34, %29, %32 : vector<128x128xi1>, vector<128x128xf32>
    %c2 = arith.constant 2 : index
    %c0_19 = arith.constant 0 : index
    %c0_20 = arith.constant 0 : index
    %36 = vector.load %arg2[%c2, %c0_19, %c0_20] : memref<7x128x128xf32, #tpu.memory_space<vmem>>, vector<1x128x128xf32>
    %37 = vector.shape_cast %36 : vector<1x128x128xf32> to vector<128x128xf32>
    %cst_21 = arith.constant dense<0.000000e+00> : vector<128x128xf32>
    %38 = tpu.matmul %37, %35, %cst_21 {dimension_numbers = #tpu.dot_dimension_numbers<[1], [0], [0], [1], [0, 0, 1, 1], [], []>} : vector<128x128xf32>, vector<128x128xf32>, vector<128x128xf32> -> vector<128x128xf32>
    %39 = arith.addf %28, %38 : vector<128x128xf32>
    %c127_i32 = arith.constant 127 : i32
    %40 = tpu.dynamic_rotate %3 by %c127_i32 dim 1 : vector<128x128xf32>, i32 -> vector<128x128xf32>
    %c127_i32_22 = arith.constant 127 : i32
    %41 = vector.broadcast %c127_i32_22 : i32 to vector<1x128xi32>
    %42 = arith.cmpi slt, %1, %41 : vector<1x128xi32>
    %cst_23 = arith.constant 0.000000e+00 : f32
    %43 = vector.broadcast %cst_23 : f32 to vector<128x128xf32>
    %44 = vector.shape_cast %42 : vector<1x128xi1> to vector<1x128xi1>
    %45 = vector.broadcast %44 : vector<1x128xi1> to vector<128x128xi1>
    %46 = arith.select %45, %40, %43 : vector<128x128xi1>, vector<128x128xf32>
    %c4 = arith.constant 4 : index
    %c0_24 = arith.constant 0 : index
    %c0_25 = arith.constant 0 : index
    %47 = vector.load %arg2[%c4, %c0_24, %c0_25] : memref<7x128x128xf32, #tpu.memory_space<vmem>>, vector<1x128x128xf32>
    %48 = vector.shape_cast %47 : vector<1x128x128xf32> to vector<128x128xf32>
    %cst_26 = arith.constant dense<0.000000e+00> : vector<128x128xf32>
    %49 = tpu.matmul %48, %46, %cst_26 {dimension_numbers = #tpu.dot_dimension_numbers<[1], [0], [0], [1], [0, 0, 1, 1], [], []>} : vector<128x128xf32>, vector<128x128xf32>, vector<128x128xf32> -> vector<128x128xf32>
    %50 = arith.addf %39, %49 : vector<128x128xf32>
    %c126_i32 = arith.constant 126 : i32
    %51 = tpu.dynamic_rotate %3 by %c126_i32 dim 1 : vector<128x128xf32>, i32 -> vector<128x128xf32>
    %c126_i32_27 = arith.constant 126 : i32
    %52 = vector.broadcast %c126_i32_27 : i32 to vector<1x128xi32>
    %53 = arith.cmpi slt, %1, %52 : vector<1x128xi32>
    %cst_28 = arith.constant 0.000000e+00 : f32
    %54 = vector.broadcast %cst_28 : f32 to vector<128x128xf32>
    %55 = vector.shape_cast %53 : vector<1x128xi1> to vector<1x128xi1>
    %56 = vector.broadcast %55 : vector<1x128xi1> to vector<128x128xi1>
    %57 = arith.select %56, %51, %54 : vector<128x128xi1>, vector<128x128xf32>
    %c5 = arith.constant 5 : index
    %c0_29 = arith.constant 0 : index
    %c0_30 = arith.constant 0 : index
    %58 = vector.load %arg2[%c5, %c0_29, %c0_30] : memref<7x128x128xf32, #tpu.memory_space<vmem>>, vector<1x128x128xf32>
    %59 = vector.shape_cast %58 : vector<1x128x128xf32> to vector<128x128xf32>
    %cst_31 = arith.constant dense<0.000000e+00> : vector<128x128xf32>
    %60 = tpu.matmul %59, %57, %cst_31 {dimension_numbers = #tpu.dot_dimension_numbers<[1], [0], [0], [1], [0, 0, 1, 1], [], []>} : vector<128x128xf32>, vector<128x128xf32>, vector<128x128xf32> -> vector<128x128xf32>
    %61 = arith.addf %50, %60 : vector<128x128xf32>
    %c125_i32 = arith.constant 125 : i32
    %62 = tpu.dynamic_rotate %3 by %c125_i32 dim 1 : vector<128x128xf32>, i32 -> vector<128x128xf32>
    %c125_i32_32 = arith.constant 125 : i32
    %63 = vector.broadcast %c125_i32_32 : i32 to vector<1x128xi32>
    %64 = arith.cmpi slt, %1, %63 : vector<1x128xi32>
    %cst_33 = arith.constant 0.000000e+00 : f32
    %65 = vector.broadcast %cst_33 : f32 to vector<128x128xf32>
    %66 = vector.shape_cast %64 : vector<1x128xi1> to vector<1x128xi1>
    %67 = vector.broadcast %66 : vector<1x128xi1> to vector<128x128xi1>
    %68 = arith.select %67, %62, %65 : vector<128x128xi1>, vector<128x128xf32>
    %c6 = arith.constant 6 : index
    %c0_34 = arith.constant 0 : index
    %c0_35 = arith.constant 0 : index
    %69 = vector.load %arg2[%c6, %c0_34, %c0_35] : memref<7x128x128xf32, #tpu.memory_space<vmem>>, vector<1x128x128xf32>
    %70 = vector.shape_cast %69 : vector<1x128x128xf32> to vector<128x128xf32>
    %cst_36 = arith.constant dense<0.000000e+00> : vector<128x128xf32>
    %71 = tpu.matmul %70, %68, %cst_36 {dimension_numbers = #tpu.dot_dimension_numbers<[1], [0], [0], [1], [0, 0, 1, 1], [], []>} : vector<128x128xf32>, vector<128x128xf32>, vector<128x128xf32> -> vector<128x128xf32>
    %72 = arith.addf %61, %71 : vector<128x128xf32>
    %73 = vector.broadcast %0 : vector<128x1xf32> to vector<128x128xf32>
    %74 = arith.addf %72, %73 : vector<128x128xf32>
    %c0_37 = arith.constant 0 : index
    %c0_38 = arith.constant 0 : index
    %c0_39 = arith.constant 0 : index
    %75 = vector.load %arg4[%c0_37, %c0_38, %c0_39] : memref<1x128x128xf32, #tpu.memory_space<vmem>>, vector<1x128x128xf32>
    %76 = vector.shape_cast %75 : vector<1x128x128xf32> to vector<128x128xf32>
    %77 = vector.shape_cast %74 : vector<128x128xf32> to vector<1x128x128xf32>
    tpu.vector_store %arg4[%c0_37, %c0_38, %c0_39], %77 {strides = array<i32>} : memref<1x128x128xf32, #tpu.memory_space<vmem>>, vector<1x128x128xf32>,
    return
  }
  func.func @transform_0(%arg0: i32) -> (i32, i32, i32) {
    %c0_i32 = arith.constant 0 : i32
    %c0_i32_0 = arith.constant 0 : i32
    %c0_i32_1 = arith.constant 0 : i32
    return %arg0, %c0_i32, %c0_i32_0 : i32, i32, i32
  }
  func.func @transform_1(%arg0: i32) -> (i32, i32, i32) {
    %c0_i32 = arith.constant 0 : i32
    %c0_i32_0 = arith.constant 0 : i32
    %c0_i32_1 = arith.constant 0 : i32
    %c0_i32_2 = arith.constant 0 : i32
    return %c0_i32, %c0_i32_0, %c0_i32_1 : i32, i32, i32
  }
  func.func @transform_2(%arg0: i32) -> (i32, i32) {
    %c0_i32 = arith.constant 0 : i32
    %c0_i32_0 = arith.constant 0 : i32
    %c0_i32_1 = arith.constant 0 : i32
    return %c0_i32, %c0_i32_0 : i32, i32
  }
  func.func @transform_3(%arg0: i32) -> (i32, i32, i32) {
    %c0_i32 = arith.constant 0 : i32
    %c0_i32_0 = arith.constant 0 : i32
    %c0_i32_1 = arith.constant 0 : i32
    return %arg0, %c0_i32, %c0_i32_0 : i32, i32, i32
  }
}

</mosaic_0001>

<llo_original>
// kernel: tpu_custom_call.1
$region0: #{tpu_custom_call.1}
  #allocation0 [shape = 'u32[]', space=smem, size = 0x4, offset = 0x4, fixed_abs, tag = 'smem constant byte address 0x4 - core index']
  #allocation1 [shape = 'u32[72,128]{1,0:T(1,128)}', space=vmem, size = 0x9000, scoped, tag = 'internal scratch']
  %s0 = inlined_call_operand.hbm [shape: f32[4,128,128], index: 0, kind: input, shape index: {}]
  %s1 = inlined_call_operand.hbm [shape: f32[7,128,128], index: 1, kind: input, shape index: {}]
  %s2 = inlined_call_operand.vmem [shape: f32[128,1], index: 2, kind: input, shape index: {}]
  %s3 = inlined_call_operand.hbm [shape: f32[4,128,128], index: 3, kind: output, shape index: {}]
  %s4 = sld [smem:[#allocation0]]
  $region53: #{tpu_custom_call.1} parent=0
    _
  %s6 = ssub.s32 1, %s4
  %s7 = scalar_select 0, %s6, %s4
  $region1: #{tpu_custom_call.1} parent=0
    #allocation2 [shape = 'u8[131072]{0}', space=vmem, size = 0x20000, scoped, tag = 'input window, operand 0']
    #allocation3 [shape = 's32[2]{0}', space=sflag, size = 0x8, scoped, tag = 'scoped memory for tpu_custom_call.1']
    #allocation4 [shape = 's32[2]{0}', space=sflag, size = 0x8, scoped, tag = 'scoped memory for tpu_custom_call.1']
    #allocation5 [shape = 'u8[458752]{0}', space=vmem, size = 0x70000, scoped, tag = 'input window, operand 1, single buffered']
    #allocation6 [shape = 's32[1]{0}', space=sflag, size = 0x4, scoped, tag = 'scoped memory for tpu_custom_call.1']
    #allocation7 [shape = 'u8[131072]{0}', space=vmem, size = 0x20000, scoped, tag = 'output window, operand 0']
    %8 = vsyncpa [#allocation3], 0
    %s9 = scalar_lea.sflag [#allocation3], 1
    %10 = vsyncpa %s9, 0
    %11 = vsyncpa [#allocation6], 0
    %12 = vsyncpa [#allocation4], 0
    %s13 = scalar_lea.sflag [#allocation4], 1
    %14 = vsyncpa %s13, 0
    loop: start=0, step=1, limit=6
    $region2: #{tpu_custom_call.1} parent=1 // loop_pre_header
      _
    $region3: #{tpu_custom_call.1} parent=1 // loop_header
      %s16 = sphi 0, %s20
      %p17 = scmp.ge.s32.totalorder %s16, 6
      %s26 = sphi 0, %s28
      %s29 = sphi 0, %s26
      %s30 = sphi 0, %s29
      %s46 = sphi 0, %s30
      %s50 = sphi 0, %s50
      %s52 = sphi 0, %s50
      %s53 = sphi 0, %s52
      %s67 = sphi 0, %s53
      %s71 = sphi 0, %s71
      %s73 = sphi 0, %s71
      %s74 = sphi 0, %s73
      %s88 = sphi 0, %s74
      %s94 = sphi 0, %s96
      %s97 = sphi 0, %s94
      %s98 = sphi 0, %s97
      %s114 = sphi 0, %s98
    $region4: #{tpu_custom_call.1} parent=1 // loop_header_branch
      %19 = sbr.rel (%p17) target = $region8
    $region5: #{tpu_custom_call.1} parent=1 // loop_body
      %s21 = ssub.s32 %s16, 1
      %s22 = ssub.s32 %s16, 2
      %s23 = sadd.s32 %s16, 1
      %s24 = ssub.s32 %s16, %s23
      %p25 = scmp.eq.s32.totalorder %s24, 0
      %s27 = sadd.s32 %s26, 1
      %s28 = scalar_select %p25, %s26, %s27
      %p31 = pneg %p25
      %p32 = scmp.eq.s32.totalorder %s16, 3
      %p33 = por %p31, %p32
      %p34 = scmp.ne.s32.totalorder %s26, %s29
      %p35 = scmp.eq.s32.totalorder %s16, 0
      %p36 = por %p34, %p35
      %p37 = scmp.ne.s32.totalorder %s26, %s29
      %p38 = scmp.eq.s32.totalorder %s21, 3
      %p39 = por %p37, %p38
      %p40 = scmp.ne.s32.totalorder %s29, %s30
      %p41 = scmp.eq.s32.totalorder %s21, 0
      %p42 = por %p40, %p41
      %p43 = scmp.ne.s32.totalorder %s29, %s30
      %p44 = scmp.eq.s32.totalorder %s22, 3
      %p45 = por %p43, %p44
      %p47 = scmp.ne.s32.totalorder %s30, %s46
      %p48 = scmp.eq.s32.totalorder %s22, 0
      %p49 = por %p47, %p48
      %s51 = sadd.s32 %s50, 1
      %p54 = scmp.eq.s32.totalorder %s16, 3
      %p55 = scmp.ne.s32.totalorder %s50, %s52
      %p56 = scmp.eq.s32.totalorder %s16, 0
      %p57 = por %p55, %p56
      %p58 = scmp.ne.s32.totalorder %s50, %s52
      %p59 = scmp.eq.s32.totalorder %s21, 3
      %p60 = por %p58, %p59
      %p61 = scmp.ne.s32.totalorder %s52, %s53
      %p62 = scmp.eq.s32.totalorder %s21, 0
      %p63 = por %p61, %p62
      %p64 = scmp.ne.s32.totalorder %s52, %s53
      %p65 = scmp.eq.s32.totalorder %s22, 3
      %p66 = por %p64, %p65
      %p68 = scmp.ne.s32.totalorder %s53, %s67
      %p69 = scmp.eq.s32.totalorder %s22, 0
      %p70 = por %p68, %p69
      %s72 = sadd.s32 %s71, 1
      %p75 = scmp.eq.s32.totalorder %s16, 3
      %p76 = scmp.ne.s32.totalorder %s71, %s73
      %p77 = scmp.eq.s32.totalorder %s16, 0
      %p78 = por %p76, %p77
      %p79 = scmp.ne.s32.totalorder %s71, %s73
      %p80 = scmp.eq.s32.totalorder %s21, 3
      %p81 = por %p79, %p80
      %p82 = scmp.ne.s32.totalorder %s73, %s74
      %p83 = scmp.eq.s32.totalorder %s21, 0
      %p84 = por %p82, %p83
      %p85 = scmp.ne.s32.totalorder %s73, %s74
      %p86 = scmp.eq.s32.totalorder %s22, 3
      %p87 = por %p85, %p86
      %p89 = scmp.ne.s32.totalorder %s74, %s88
      %p90 = scmp.eq.s32.totalorder %s22, 0
      %p91 = por %p89, %p90
      %s92 = ssub.s32 %s16, %s23
      %p93 = scmp.eq.s32.totalorder %s92, 0
      %s95 = sadd.s32 %s94, 1
      %s96 = scalar_select %p93, %s94, %s95
      %p99 = pneg %p93
      %p100 = scmp.eq.s32.totalorder %s16, 3
      %p101 = por %p99, %p100
      %p102 = scmp.ne.s32.totalorder %s94, %s97
      %p103 = scmp.eq.s32.totalorder %s16, 0
      %p104 = por %p102, %p103
      %p105 = scmp.ne.s32.totalorder %s94, %s97
      %p106 = scmp.eq.s32.totalorder %s21, 3
      %p107 = por %p105, %p106
      %p108 = scmp.ne.s32.totalorder %s97, %s98
      %p109 = scmp.eq.s32.totalorder %s21, 0
      %p110 = por %p108, %p109
      %p111 = scmp.ne.s32.totalorder %s97, %s98
      %p112 = scmp.eq.s32.totalorder %s22, 3
      %p113 = por %p111, %p112
      %p115 = scmp.ne.s32.totalorder %s98, %s114
      %p116 = scmp.eq.s32.totalorder %s22, 0
      %p117 = por %p115, %p116
      %p118 = scmp.le.s32.totalorder 1, %s16
      %p119 = scmp.lt.s32.totalorder %s16, 5
      %p120 = pnand %p118, %p119
      %p121 = pneg %p120
      // Predicated region
      $region9: #{tpu_custom_call.1} parent=5 // pred_check
        _
      $region10: #{tpu_custom_call.1} parent=5 // pred_check_branch
        %123 = sbr.rel (%p120) target = $region12
      $region11: #{tpu_custom_call.1} parent=5 // pred_region
        %s124 = ssub.s32 %s16, 1
        // Predicated region
        $region13: #{tpu_custom_call.1} parent=11 // pred_check
          %p125 = pneg %p63
        $region14: #{tpu_custom_call.1} parent=11 // pred_check_branch
          %127 = sbr.rel (%p125) target = $region16
        $region15: #{tpu_custom_call.1} parent=11 // pred_region
          %129 = vsyncadd [#allocation6], 0
          %s130 = sshll.u32 %s1, 4
          %s131 = int_to_ptr.hbm [resolvable:$true] %s130
          %s132 = sshll.u32 [#allocation5], 4
          %s133 = int_to_ptr.vmem [resolvable:$true] %s132
          %138 = dma.hbm_to_vmem [thread:$0]  %s131, 14336, %s133, [#allocation6], 128, 128, 8
        $region16: #{tpu_custom_call.1} parent=11 // pred_fallthru
          _
        // Predicated region
        $region17: #{tpu_custom_call.1} parent=11 // pred_check
          %p139 = pneg %p84
        $region18: #{tpu_custom_call.1} parent=11 // pred_check_branch
          %141 = sbr.rel (%p139) target = $region20
        $region19: #{tpu_custom_call.1} parent=11 // pred_region
          _
        $region20: #{tpu_custom_call.1} parent=11 // pred_fallthru
          _
      $region12: #{tpu_custom_call.1} parent=5 // pred_fallthru
        _
      %p142 = scmp.lt.s32.totalorder %s16, 4
      // Predicated region
      $region21: #{tpu_custom_call.1} parent=5 // pred_check
        %p143 = pneg %p142
      $region22: #{tpu_custom_call.1} parent=5 // pred_check_branch
        %145 = sbr.rel (%p143) target = $region24
      $region23: #{tpu_custom_call.1} parent=5 // pred_region
        // Predicated region
        $region25: #{tpu_custom_call.1} parent=23 // pred_check
          %p146 = pneg %p36
        $region26: #{tpu_custom_call.1} parent=23 // pred_check_branch
          %148 = sbr.rel (%p146) target = $region28
        $region27: #{tpu_custom_call.1} parent=23 // pred_region
          %s149 = sand.u32 %s26, 1
          %s150 = scalar_lea.sflag [#allocation3], %s149
          %s151 = sand.u32 %s26, 1
          %s152 = smul.addr %s151, 128
          %s153 = scalar_lea.vmem [#allocation2], %s152
          %155 = vsyncadd %s150, 0
          %s156 = smul.addr %s16, 16
          %s157 = smul.addr %s156, 8
          %s158 = scalar_lea.hbm %s0, %s157
          %s159 = sshll.u32 %s158, 4
          %s160 = int_to_ptr.hbm [resolvable:$true] %s159
          %s161 = sshll.u32 %s153, 4
          %s162 = int_to_ptr.vmem [resolvable:$true] %s161
          %167 = dma.hbm_to_vmem [thread:$0]  %s160, 2048, %s162, %s150, 128, 128, 8
        $region28: #{tpu_custom_call.1} parent=23 // pred_fallthru
          _
      $region24: #{tpu_custom_call.1} parent=5 // pred_fallthru
        _
      %p168 = scmp.le.s32.totalorder 1, %s16
      %p169 = scmp.lt.s32.totalorder %s16, 5
      %p170 = pnand %p168, %p169
      %p171 = pneg %p170
      // Predicated region
      $region29: #{tpu_custom_call.1} parent=5 // pred_check
        _
      $region30: #{tpu_custom_call.1} parent=5 // pred_check_branch
        %173 = sbr.rel (%p170) target = $region32
      $region31: #{tpu_custom_call.1} parent=5 // pred_region
        %s174 = ssub.s32 %s16, 1
        %s175 = sand.u32 %s29, 1
        %s176 = scalar_lea.sflag [#allocation3], %s175
        %s177 = sand.u32 %s29, 1
        %s178 = smul.addr %s177, 128
        %s179 = scalar_lea.vmem [#allocation2], %s178
        // Predicated region
        $region33: #{tpu_custom_call.1} parent=31 // pred_check
          %p180 = pneg %p42
        $region34: #{tpu_custom_call.1} parent=31 // pred_check_branch
          %182 = sbr.rel (%p180) target = $region36
        $region35: #{tpu_custom_call.1} parent=31 // pred_region
          %184 = dma.done %s176, 2048
        $region36: #{tpu_custom_call.1} parent=31 // pred_fallthru
          _
        // Predicated region
        $region37: #{tpu_custom_call.1} parent=31 // pred_check
          %p185 = pneg %p63
        $region38: #{tpu_custom_call.1} parent=31 // pred_check_branch
          %187 = sbr.rel (%p185) target = $region40
        $region39: #{tpu_custom_call.1} parent=31 // pred_region
          %189 = dma.done [#allocation6], 14336
        $region40: #{tpu_custom_call.1} parent=31 // pred_fallthru
          _
        %s190 = sand.u32 %s29, 1
        %s191 = scalar_lea.sflag [#allocation3], %s190
        %s192 = sand.u32 %s29, 1
        %s193 = smul.addr %s192, 128
        %s194 = scalar_lea.vmem [#allocation2], %s193
        %p195 = pneg %p42
        %p196 = pneg %p39
        %p197 = pneg %p63
        %p198 = pneg %p60
        %p199 = pneg %p84
        %p200 = pneg %p81
        %p201 = pneg %p110
        %p202 = pneg %p107
        %s203 = sand.u32 %s97, 1
        %s204 = scalar_lea.sflag [#allocation4], %s203
        %s205 = sand.u32 %s97, 1
        %s206 = smul.addr %s205, 128
        %s207 = scalar_lea.vmem [#allocation7], %s206
        %v208 = vld [vmem:[%s2] sm:$0xff]
        %v209 = vld [vmem:[%s2 + $0x8] sm:$0xff]
        %v210 = vld [vmem:[%s2 + $0x10] sm:$0xff]
        %v211 = vld [vmem:[%s2 + $0x18] sm:$0xff]
        %v212 = vld [vmem:[%s2 + $0x20] sm:$0xff]
        %v213 = vld [vmem:[%s2 + $0x28] sm:$0xff]
        %v214 = vld [vmem:[%s2 + $0x30] sm:$0xff]
        %v215 = vld [vmem:[%s2 + $0x38] sm:$0xff]
        %v216 = vld [vmem:[%s2 + $0x40] sm:$0xff]
        %v217 = vld [vmem:[%s2 + $0x48] sm:$0xff]
        %v218 = vld [vmem:[%s2 + $0x50] sm:$0xff]
        %v219 = vld [vmem:[%s2 + $0x58] sm:$0xff]
        %v220 = vld [vmem:[%s2 + $0x60] sm:$0xff]
        %v221 = vld [vmem:[%s2 + $0x68] sm:$0xff]
        %v222 = vld [vmem:[%s2 + $0x70] sm:$0xff]
        %v223 = vld [vmem:[%s2 + $0x78] sm:$0xff]
        %v224 = vlaneseq
        %v225 = vand.u32 %v224, 127
        %v226 = vld [vmem:[%s179] sm:$0xff]
        %v227 = vld [vmem:[%s179 + $0x8] sm:$0xff]
        %v228 = vld [vmem:[%s179 + $0x10] sm:$0xff]
        %v229 = vld [vmem:[%s179 + $0x18] sm:$0xff]
        %v230 = vld [vmem:[%s179 + $0x20] sm:$0xff]
        %v231 = vld [vmem:[%s179 + $0x28] sm:$0xff]
        %v232 = vld [vmem:[%s179 + $0x30] sm:$0xff]
        %v233 = vld [vmem:[%s179 + $0x38] sm:$0xff]
        %v234 = vld [vmem:[%s179 + $0x40] sm:$0xff]
        %v235 = vld [vmem:[%s179 + $0x48] sm:$0xff]
        %v236 = vld [vmem:[%s179 + $0x50] sm:$0xff]
        %v237 = vld [vmem:[%s179 + $0x58] sm:$0xff]
        %v238 = vld [vmem:[%s179 + $0x60] sm:$0xff]
        %v239 = vld [vmem:[%s179 + $0x68] sm:$0xff]
        %v240 = vld [vmem:[%s179 + $0x70] sm:$0xff]
        %v241 = vld [vmem:[%s179 + $0x78] sm:$0xff]
        %s242 = scalar_lea.vmem [#allocation5], 384
        %v243 = vld [vmem:[%s242] sm:$0xff]
        %v244 = vld [vmem:[%s242 + $0x8] sm:$0xff]
        %v245 = vld [vmem:[%s242 + $0x10] sm:$0xff]
        %v246 = vld [vmem:[%s242 + $0x18] sm:$0xff]
        %v247 = vld [vmem:[%s242 + $0x20] sm:$0xff]
        %v248 = vld [vmem:[%s242 + $0x28] sm:$0xff]
        %v249 = vld [vmem:[%s242 + $0x30] sm:$0xff]
        %v250 = vld [vmem:[%s242 + $0x38] sm:$0xff]
        %v251 = vld [vmem:[%s242 + $0x40] sm:$0xff]
        %v252 = vld [vmem:[%s242 + $0x48] sm:$0xff]
        %v253 = vld [vmem:[%s242 + $0x50] sm:$0xff]
        %v254 = vld [vmem:[%s242 + $0x58] sm:$0xff]
        %v255 = vld [vmem:[%s242 + $0x60] sm:$0xff]
        %v256 = vld [vmem:[%s242 + $0x68] sm:$0xff]
        %v257 = vld [vmem:[%s242 + $0x70] sm:$0xff]
        %v258 = vld [vmem:[%s242 + $0x78] sm:$0xff]
        %259 = vrot.lane.b32.xlu0 %v226, 3
        %v260 = vpop.permute.xlu0 %259
        %261 = vrot.lane.b32.xlu0 %v227, 3
        %v262 = vpop.permute.xlu0 %261
        %263 = vrot.lane.b32.xlu0 %v228, 3
        %v264 = vpop.permute.xlu0 %263
        %265 = vrot.lane.b32.xlu0 %v229, 3
        %v266 = vpop.permute.xlu0 %265
        %267 = vrot.lane.b32.xlu0 %v230, 3
        %v268 = vpop.permute.xlu0 %267
        %269 = vrot.lane.b32.xlu0 %v231, 3
        %v270 = vpop.permute.xlu0 %269
        %271 = vrot.lane.b32.xlu0 %v232, 3
        %v272 = vpop.permute.xlu0 %271
        %273 = vrot.lane.b32.xlu0 %v233, 3
        %v274 = vpop.permute.xlu0 %273
        %275 = vrot.lane.b32.xlu0 %v234, 3
        %v276 = vpop.permute.xlu0 %275
        %277 = vrot.lane.b32.xlu0 %v235, 3
        %v278 = vpop.permute.xlu0 %277
        %279 = vrot.lane.b32.xlu0 %v236, 3
        %v280 = vpop.permute.xlu0 %279
        %281 = vrot.lane.b32.xlu0 %v237, 3
        %v282 = vpop.permute.xlu0 %281
        %283 = vrot.lane.b32.xlu0 %v238, 3
        %v284 = vpop.permute.xlu0 %283
        %285 = vrot.lane.b32.xlu0 %v239, 3
        %v286 = vpop.permute.xlu0 %285
        %287 = vrot.lane.b32.xlu0 %v240, 3
        %v288 = vpop.permute.xlu0 %287
        %289 = vrot.lane.b32.xlu0 %v241, 3
        %v290 = vpop.permute.xlu0 %289
        %vm291 = vcmp.ge.s32.totalorder %v225, 3
        %v292 = vsel %vm291, 1, 0
        %vm293 = vcmp.eq.s32.totalorder %v292, 1
        %v294 = vsel %vm293, %v260, 0.0
        %v295 = vsel %vm293, %v262, 0.0
        %v296 = vsel %vm293, %v264, 0.0
        %v297 = vsel %vm293, %v266, 0.0
        %v298 = vsel %vm293, %v268, 0.0
        %v299 = vsel %vm293, %v270, 0.0
        %v300 = vsel %vm293, %v272, 0.0
        %v301 = vsel %vm293, %v274, 0.0
        %v302 = vsel %vm293, %v276, 0.0
        %v303 = vsel %vm293, %v278, 0.0
        %v304 = vsel %vm293, %v280, 0.0
        %v305 = vsel %vm293, %v282, 0.0
        %v306 = vsel %vm293, %v284, 0.0
        %v307 = vsel %vm293, %v286, 0.0
        %v308 = vsel %vm293, %v288, 0.0
        %v309 = vsel %vm293, %v290, 0.0
        %v310 = vld [vmem:[#allocation5] sm:$0xff]
        %v311 = vld [vmem:[#allocation5 + $0x8] sm:$0xff]
        %v312 = vld [vmem:[#allocation5 + $0x10] sm:$0xff]
        %v313 = vld [vmem:[#allocation5 + $0x18] sm:$0xff]
        %v314 = vld [vmem:[#allocation5 + $0x20] sm:$0xff]
        %v315 = vld [vmem:[#allocation5 + $0x28] sm:$0xff]
        %v316 = vld [vmem:[#allocation5 + $0x30] sm:$0xff]
        %v317 = vld [vmem:[#allocation5 + $0x38] sm:$0xff]
        %v318 = vld [vmem:[#allocation5 + $0x40] sm:$0xff]
        %v319 = vld [vmem:[#allocation5 + $0x48] sm:$0xff]
        %v320 = vld [vmem:[#allocation5 + $0x50] sm:$0xff]
        %v321 = vld [vmem:[#allocation5 + $0x58] sm:$0xff]
        %v322 = vld [vmem:[#allocation5 + $0x60] sm:$0xff]
        %v323 = vld [vmem:[#allocation5 + $0x68] sm:$0xff]
        %v324 = vld [vmem:[#allocation5 + $0x70] sm:$0xff]
        %v325 = vld [vmem:[#allocation5 + $0x78] sm:$0xff]
        %326 = vmatpush.msra.mxu0 %v309
        %327 = vmatpush.msra.mxu0 %v308
        %328 = vmatpush.msra.mxu0 %v307
        %329 = vmatpush.msra.mxu0 %v306
        %330 = vmatpush.msra.mxu0 %v305
        %331 = vmatpush.msra.mxu0 %v304
        %332 = vmatpush.msra.mxu0 %v303
        %333 = vmatpush.msra.mxu0 %v302
        %334 = vmatpush.msra.mxu0 %v301
        %335 = vmatpush.msra.mxu0 %v300
        %336 = vmatpush.msra.mxu0 %v299
        %337 = vmatpush.msra.mxu0 %v298
        %338 = vmatpush.msra.mxu0 %v297
        %339 = vmatpush.msra.mxu0 %v296
        %340 = vmatpush.msra.mxu0 %v295
        %341 = vmatpush.msra.mxu0 %v294
        %342 = vmatmul.f32.gmra.mxu0 %v310
        %v343 = vpop.f32.mrf.mxu0
        %v344 = vadd.f32 0.0, %v343
        %345 = vmatmul.f32.gmra.mxu0 %v311
        %v346 = vpop.f32.mrf.mxu0
        %v347 = vadd.f32 0.0, %v346
        %348 = vmatmul.f32.gmra.mxu0 %v312
        %v349 = vpop.f32.mrf.mxu0
        %v350 = vadd.f32 0.0, %v349
        %351 = vmatmul.f32.gmra.mxu0 %v313
        %v352 = vpop.f32.mrf.mxu0
        %v353 = vadd.f32 0.0, %v352
        %354 = vmatmul.f32.gmra.mxu0 %v314
        %v355 = vpop.f32.mrf.mxu0
        %v356 = vadd.f32 0.0, %v355
        %357 = vmatmul.f32.gmra.mxu0 %v315
        %v358 = vpop.f32.mrf.mxu0
        %v359 = vadd.f32 0.0, %v358
        %360 = vmatmul.f32.gmra.mxu0 %v316
        %v361 = vpop.f32.mrf.mxu0
        %v362 = vadd.f32 0.0, %v361
        %363 = vmatmul.f32.gmra.mxu0 %v317
        %v364 = vpop.f32.mrf.mxu0
        %v365 = vadd.f32 0.0, %v364
        %366 = vmatmul.f32.gmra.mxu0 %v318
        %v367 = vpop.f32.mrf.mxu0
        %v368 = vadd.f32 0.0, %v367
        %369 = vmatmul.f32.gmra.mxu0 %v319
        %v370 = vpop.f32.mrf.mxu0
        %v371 = vadd.f32 0.0, %v370
        %372 = vmatmul.f32.gmra.mxu0 %v320
        %v373 = vpop.f32.mrf.mxu0
        %v374 = vadd.f32 0.0, %v373
        %375 = vmatmul.f32.gmra.mxu0 %v321
        %v376 = vpop.f32.mrf.mxu0
        %v377 = vadd.f32 0.0, %v376
        %378 = vmatmul.f32.gmra.mxu0 %v322
        %v379 = vpop.f32.mrf.mxu0
        %v380 = vadd.f32 0.0, %v379
        %381 = vmatmul.f32.gmra.mxu0 %v323
        %v382 = vpop.f32.mrf.mxu0
        %v383 = vadd.f32 0.0, %v382
        %384 = vmatmul.f32.gmra.mxu0 %v324
        %v385 = vpop.f32.mrf.mxu0
        %v386 = vadd.f32 0.0, %v385
        %387 = vmatmul.f32.gmra.mxu0 %v325
        %v388 = vpop.f32.mrf.mxu0
        %v389 = vadd.f32 0.0, %v388
        %390 = vdwg.mxu0
        %391 = vmatpush.msra.mxu0 %v241
        %392 = vmatpush.msra.mxu0 %v240
        %393 = vmatpush.msra.mxu0 %v239
        %394 = vmatpush.msra.mxu0 %v238
        %395 = vmatpush.msra.mxu0 %v237
        %396 = vmatpush.msra.mxu0 %v236
        %397 = vmatpush.msra.mxu0 %v235
        %398 = vmatpush.msra.mxu0 %v234
        %399 = vmatpush.msra.mxu0 %v233
        %400 = vmatpush.msra.mxu0 %v232
        %401 = vmatpush.msra.mxu0 %v231
        %402 = vmatpush.msra.mxu0 %v230
        %403 = vmatpush.msra.mxu0 %v229
        %404 = vmatpush.msra.mxu0 %v228
        %405 = vmatpush.msra.mxu0 %v227
        %406 = vmatpush.msra.mxu0 %v226
        %407 = vmatmul.f32.gmra.mxu0 %v243
        %v408 = vpop.f32.mrf.mxu0
        %v409 = vadd.f32 %v344, %v408
        %410 = vmatmul.f32.gmra.mxu0 %v244
        %v411 = vpop.f32.mrf.mxu0
        %v412 = vadd.f32 %v347, %v411
        %413 = vmatmul.f32.gmra.mxu0 %v245
        %v414 = vpop.f32.mrf.mxu0
        %v415 = vadd.f32 %v350, %v414
        %416 = vmatmul.f32.gmra.mxu0 %v246
        %v417 = vpop.f32.mrf.mxu0
        %v418 = vadd.f32 %v353, %v417
        %419 = vmatmul.f32.gmra.mxu0 %v247
        %v420 = vpop.f32.mrf.mxu0
        %v421 = vadd.f32 %v356, %v420
        %422 = vmatmul.f32.gmra.mxu0 %v248
        %v423 = vpop.f32.mrf.mxu0
        %v424 = vadd.f32 %v359, %v423
        %425 = vmatmul.f32.gmra.mxu0 %v249
        %v426 = vpop.f32.mrf.mxu0
        %v427 = vadd.f32 %v362, %v426
        %428 = vmatmul.f32.gmra.mxu0 %v250
        %v429 = vpop.f32.mrf.mxu0
        %v430 = vadd.f32 %v365, %v429
        %431 = vmatmul.f32.gmra.mxu0 %v251
        %v432 = vpop.f32.mrf.mxu0
        %v433 = vadd.f32 %v368, %v432
        %434 = vmatmul.f32.gmra.mxu0 %v252
        %v435 = vpop.f32.mrf.mxu0
        %v436 = vadd.f32 %v371, %v435
        %437 = vmatmul.f32.gmra.mxu0 %v253
        %v438 = vpop.f32.mrf.mxu0
        %v439 = vadd.f32 %v374, %v438
        %440 = vmatmul.f32.gmra.mxu0 %v254
        %v441 = vpop.f32.mrf.mxu0
        %v442 = vadd.f32 %v377, %v441
        %443 = vmatmul.f32.gmra.mxu0 %v255
        %v444 = vpop.f32.mrf.mxu0
        %v445 = vadd.f32 %v380, %v444
        %446 = vmatmul.f32.gmra.mxu0 %v256
        %v447 = vpop.f32.mrf.mxu0
        %v448 = vadd.f32 %v383, %v447
        %449 = vmatmul.f32.gmra.mxu0 %v257
        %v450 = vpop.f32.mrf.mxu0
        %v451 = vadd.f32 %v386, %v450
        %452 = vmatmul.f32.gmra.mxu0 %v258
        %v453 = vpop.f32.mrf.mxu0
        %v454 = vadd.f32 %v389, %v453
        %455 = vdwg.mxu0
        %456 = vrot.lane.b32.xlu0 %v226, 2
        %v457 = vpop.permute.xlu0 %456
        %458 = vrot.lane.b32.xlu0 %v227, 2
        %v459 = vpop.permute.xlu0 %458
        %460 = vrot.lane.b32.xlu0 %v228, 2
        %v461 = vpop.permute.xlu0 %460
        %462 = vrot.lane.b32.xlu0 %v229, 2
        %v463 = vpop.permute.xlu0 %462
        %464 = vrot.lane.b32.xlu0 %v230, 2
        %v465 = vpop.permute.xlu0 %464
        %466 = vrot.lane.b32.xlu0 %v231, 2
        %v467 = vpop.permute.xlu0 %466
        %468 = vrot.lane.b32.xlu0 %v232, 2
        %v469 = vpop.permute.xlu0 %468
        %470 = vrot.lane.b32.xlu0 %v233, 2
        %v471 = vpop.permute.xlu0 %470
        %472 = vrot.lane.b32.xlu0 %v234, 2
        %v473 = vpop.permute.xlu0 %472
        %474 = vrot.lane.b32.xlu0 %v235, 2
        %v475 = vpop.permute.xlu0 %474
        %476 = vrot.lane.b32.xlu0 %v236, 2
        %v477 = vpop.permute.xlu0 %476
        %478 = vrot.lane.b32.xlu0 %v237, 2
        %v479 = vpop.permute.xlu0 %478
        %480 = vrot.lane.b32.xlu0 %v238, 2
        %v481 = vpop.permute.xlu0 %480
        %482 = vrot.lane.b32.xlu0 %v239, 2
        %v483 = vpop.permute.xlu0 %482
        %484 = vrot.lane.b32.xlu0 %v240, 2
        %v485 = vpop.permute.xlu0 %484
        %486 = vrot.lane.b32.xlu0 %v241, 2
        %v487 = vpop.permute.xlu0 %486
        %vm488 = vcmp.ge.s32.totalorder %v225, 2
        %v489 = vsel %vm488, 1, 0
        %vm490 = vcmp.eq.s32.totalorder %v489, 1
        %v491 = vsel %vm490, %v457, 0.0
        %v492 = vsel %vm490, %v459, 0.0
        %v493 = vsel %vm490, %v461, 0.0
        %v494 = vsel %vm490, %v463, 0.0
        %v495 = vsel %vm490, %v465, 0.0
        %v496 = vsel %vm490, %v467, 0.0
        %v497 = vsel %vm490, %v469, 0.0
        %v498 = vsel %vm490, %v471, 0.0
        %v499 = vsel %vm490, %v473, 0.0
        %v500 = vsel %vm490, %v475, 0.0
        %v501 = vsel %vm490, %v477, 0.0
        %v502 = vsel %vm490, %v479, 0.0
        %v503 = vsel %vm490, %v481, 0.0
        %v504 = vsel %vm490, %v483, 0.0
        %v505 = vsel %vm490, %v485, 0.0
        %v506 = vsel %vm490, %v487, 0.0
        %s507 = scalar_lea.vmem [#allocation5], 128
        %v508 = vld [vmem:[%s507] sm:$0xff]
        %v509 = vld [vmem:[%s507 + $0x8] sm:$0xff]
        %v510 = vld [vmem:[%s507 + $0x10] sm:$0xff]
        %v511 = vld [vmem:[%s507 + $0x18] sm:$0xff]
        %v512 = vld [vmem:[%s507 + $0x20] sm:$0xff]
        %v513 = vld [vmem:[%s507 + $0x28] sm:$0xff]
        %v514 = vld [vmem:[%s507 + $0x30] sm:$0xff]
        %v515 = vld [vmem:[%s507 + $0x38] sm:$0xff]
        %v516 = vld [vmem:[%s507 + $0x40] sm:$0xff]
        %v517 = vld [vmem:[%s507 + $0x48] sm:$0xff]
        %v518 = vld [vmem:[%s507 + $0x50] sm:$0xff]
        %v519 = vld [vmem:[%s507 + $0x58] sm:$0xff]
        %v520 = vld [vmem:[%s507 + $0x60] sm:$0xff]
        %v521 = vld [vmem:[%s507 + $0x68] sm:$0xff]
        %v522 = vld [vmem:[%s507 + $0x70] sm:$0xff]
        %v523 = vld [vmem:[%s507 + $0x78] sm:$0xff]
        %524 = vmatpush.msra.mxu0 %v506
        %525 = vmatpush.msra.mxu0 %v505
        %526 = vmatpush.msra.mxu0 %v504
        %527 = vmatpush.msra.mxu0 %v503
        %528 = vmatpush.msra.mxu0 %v502
        %529 = vmatpush.msra.mxu0 %v501
        %530 = vmatpush.msra.mxu0 %v500
        %531 = vmatpush.msra.mxu0 %v499
        %532 = vmatpush.msra.mxu0 %v498
        %533 = vmatpush.msra.mxu0 %v497
        %534 = vmatpush.msra.mxu0 %v496
        %535 = vmatpush.msra.mxu0 %v495
        %536 = vmatpush.msra.mxu0 %v494
        %537 = vmatpush.msra.mxu0 %v493
        %538 = vmatpush.msra.mxu0 %v492
        %539 = vmatpush.msra.mxu0 %v491
        %540 = vmatmul.f32.gmra.mxu0 %v508
        %v541 = vpop.f32.mrf.mxu0
        %v542 = vadd.f32 0.0, %v541
        %543 = vmatmul.f32.gmra.mxu0 %v509
        %v544 = vpop.f32.mrf.mxu0
        %v545 = vadd.f32 0.0, %v544
        %546 = vmatmul.f32.gmra.mxu0 %v510
        %v547 = vpop.f32.mrf.mxu0
        %v548 = vadd.f32 0.0, %v547
        %549 = vmatmul.f32.gmra.mxu0 %v511
        %v550 = vpop.f32.mrf.mxu0
        %v551 = vadd.f32 0.0, %v550
        %552 = vmatmul.f32.gmra.mxu0 %v512
        %v553 = vpop.f32.mrf.mxu0
        %v554 = vadd.f32 0.0, %v553
        %555 = vmatmul.f32.gmra.mxu0 %v513
        %v556 = vpop.f32.mrf.mxu0
        %v557 = vadd.f32 0.0, %v556
        %558 = vmatmul.f32.gmra.mxu0 %v514
        %v559 = vpop.f32.mrf.mxu0
        %v560 = vadd.f32 0.0, %v559
        %561 = vmatmul.f32.gmra.mxu0 %v515
        %v562 = vpop.f32.mrf.mxu0
        %v563 = vadd.f32 0.0, %v562
        %564 = vmatmul.f32.gmra.mxu0 %v516
        %v565 = vpop.f32.mrf.mxu0
        %v566 = vadd.f32 0.0, %v565
        %567 = vmatmul.f32.gmra.mxu0 %v517
        %v568 = vpop.f32.mrf.mxu0
        %v569 = vadd.f32 0.0, %v568
        %570 = vmatmul.f32.gmra.mxu0 %v518
        %v571 = vpop.f32.mrf.mxu0
        %v572 = vadd.f32 0.0, %v571
        %573 = vmatmul.f32.gmra.mxu0 %v519
        %v574 = vpop.f32.mrf.mxu0
        %v575 = vadd.f32 0.0, %v574
        %576 = vmatmul.f32.gmra.mxu0 %v520
        %v577 = vpop.f32.mrf.mxu0
        %v578 = vadd.f32 0.0, %v577
        %579 = vmatmul.f32.gmra.mxu0 %v521
        %v580 = vpop.f32.mrf.mxu0
        %v581 = vadd.f32 0.0, %v580
        %582 = vmatmul.f32.gmra.mxu0 %v522
        %v583 = vpop.f32.mrf.mxu0
        %v584 = vadd.f32 0.0, %v583
        %585 = vmatmul.f32.gmra.mxu0 %v523
        %v586 = vpop.f32.mrf.mxu0
        %v587 = vadd.f32 0.0, %v586
        %588 = vdwg.mxu0
        %v589 = vadd.f32 %v409, %v542
        %v590 = vadd.f32 %v412, %v545
        %v591 = vadd.f32 %v415, %v548
        %v592 = vadd.f32 %v418, %v551
        %v593 = vadd.f32 %v421, %v554
        %v594 = vadd.f32 %v424, %v557
        %v595 = vadd.f32 %v427, %v560
        %v596 = vadd.f32 %v430, %v563
        %v597 = vadd.f32 %v433, %v566
        %v598 = vadd.f32 %v436, %v569
        %v599 = vadd.f32 %v439, %v572
        %v600 = vadd.f32 %v442, %v575
        %v601 = vadd.f32 %v445, %v578
        %v602 = vadd.f32 %v448, %v581
        %v603 = vadd.f32 %v451, %v584
        %v604 = vadd.f32 %v454, %v587
        %605 = vrot.lane.b32.xlu0 %v226, 1
        %v606 = vpop.permute.xlu0 %605
        %607 = vrot.lane.b32.xlu0 %v227, 1
        %v608 = vpop.permute.xlu0 %607
        %609 = vrot.lane.b32.xlu0 %v228, 1
        %v610 = vpop.permute.xlu0 %609
        %611 = vrot.lane.b32.xlu0 %v229, 1
        %v612 = vpop.permute.xlu0 %611
        %613 = vrot.lane.b32.xlu0 %v230, 1
        %v614 = vpop.permute.xlu0 %613
        %615 = vrot.lane.b32.xlu0 %v231, 1
        %v616 = vpop.permute.xlu0 %615
        %617 = vrot.lane.b32.xlu0 %v232, 1
        %v618 = vpop.permute.xlu0 %617
        %619 = vrot.lane.b32.xlu0 %v233, 1
        %v620 = vpop.permute.xlu0 %619
        %621 = vrot.lane.b32.xlu0 %v234, 1
        %v622 = vpop.permute.xlu0 %621
        %623 = vrot.lane.b32.xlu0 %v235, 1
        %v624 = vpop.permute.xlu0 %623
        %625 = vrot.lane.b32.xlu0 %v236, 1
        %v626 = vpop.permute.xlu0 %625
        %627 = vrot.lane.b32.xlu0 %v237, 1
        %v628 = vpop.permute.xlu0 %627
        %629 = vrot.lane.b32.xlu0 %v238, 1
        %v630 = vpop.permute.xlu0 %629
        %631 = vrot.lane.b32.xlu0 %v239, 1
        %v632 = vpop.permute.xlu0 %631
        %633 = vrot.lane.b32.xlu0 %v240, 1
        %v634 = vpop.permute.xlu0 %633
        %635 = vrot.lane.b32.xlu0 %v241, 1
        %v636 = vpop.permute.xlu0 %635
        %vm637 = vcmp.ge.s32.totalorder %v225, 1
        %v638 = vsel %vm637, 1, 0
        %vm639 = vcmp.eq.s32.totalorder %v638, 1
        %v640 = vsel %vm639, %v606, 0.0
        %v641 = vsel %vm639, %v608, 0.0
        %v642 = vsel %vm639, %v610, 0.0
        %v643 = vsel %vm639, %v612, 0.0
        %v644 = vsel %vm639, %v614, 0.0
        %v645 = vsel %vm639, %v616, 0.0
        %v646 = vsel %vm639, %v618, 0.0
        %v647 = vsel %vm639, %v620, 0.0
        %v648 = vsel %vm639, %v622, 0.0
        %v649 = vsel %vm639, %v624, 0.0
        %v650 = vsel %vm639, %v626, 0.0
        %v651 = vsel %vm639, %v628, 0.0
        %v652 = vsel %vm639, %v630, 0.0
        %v653 = vsel %vm639, %v632, 0.0
        %v654 = vsel %vm639, %v634, 0.0
        %v655 = vsel %vm639, %v636, 0.0
        %s656 = scalar_lea.vmem [#allocation5], 256
        %v657 = vld [vmem:[%s656] sm:$0xff]
        %v658 = vld [vmem:[%s656 + $0x8] sm:$0xff]
        %v659 = vld [vmem:[%s656 + $0x10] sm:$0xff]
        %v660 = vld [vmem:[%s656 + $0x18] sm:$0xff]
        %v661 = vld [vmem:[%s656 + $0x20] sm:$0xff]
        %v662 = vld [vmem:[%s656 + $0x28] sm:$0xff]
        %v663 = vld [vmem:[%s656 + $0x30] sm:$0xff]
        %v664 = vld [vmem:[%s656 + $0x38] sm:$0xff]
        %v665 = vld [vmem:[%s656 + $0x40] sm:$0xff]
        %v666 = vld [vmem:[%s656 + $0x48] sm:$0xff]
        %v667 = vld [vmem:[%s656 + $0x50] sm:$0xff]
        %v668 = vld [vmem:[%s656 + $0x58] sm:$0xff]
        %v669 = vld [vmem:[%s656 + $0x60] sm:$0xff]
        %v670 = vld [vmem:[%s656 + $0x68] sm:$0xff]
        %v671 = vld [vmem:[%s656 + $0x70] sm:$0xff]
        %v672 = vld [vmem:[%s656 + $0x78] sm:$0xff]
        %673 = vmatpush.msra.mxu0 %v655
        %674 = vmatpush.msra.mxu0 %v654
        %675 = vmatpush.msra.mxu0 %v653
        %676 = vmatpush.msra.mxu0 %v652
        %677 = vmatpush.msra.mxu0 %v651
        %678 = vmatpush.msra.mxu0 %v650
        %679 = vmatpush.msra.mxu0 %v649
        %680 = vmatpush.msra.mxu0 %v648
        %681 = vmatpush.msra.mxu0 %v647
        %682 = vmatpush.msra.mxu0 %v646
        %683 = vmatpush.msra.mxu0 %v645
        %684 = vmatpush.msra.mxu0 %v644
        %685 = vmatpush.msra.mxu0 %v643
        %686 = vmatpush.msra.mxu0 %v642
        %687 = vmatpush.msra.mxu0 %v641
        %688 = vmatpush.msra.mxu0 %v640
        %689 = vmatmul.f32.gmra.mxu0 %v657
        %v690 = vpop.f32.mrf.mxu0
        %v691 = vadd.f32 0.0, %v690
        %692 = vmatmul.f32.gmra.mxu0 %v658
        %v693 = vpop.f32.mrf.mxu0
        %v694 = vadd.f32 0.0, %v693
        %695 = vmatmul.f32.gmra.mxu0 %v659
        %v696 = vpop.f32.mrf.mxu0
        %v697 = vadd.f32 0.0, %v696
        %698 = vmatmul.f32.gmra.mxu0 %v660
        %v699 = vpop.f32.mrf.mxu0
        %v700 = vadd.f32 0.0, %v699
        %701 = vmatmul.f32.gmra.mxu0 %v661
        %v702 = vpop.f32.mrf.mxu0
        %v703 = vadd.f32 0.0, %v702
        %704 = vmatmul.f32.gmra.mxu0 %v662
        %v705 = vpop.f32.mrf.mxu0
        %v706 = vadd.f32 0.0, %v705
        %707 = vmatmul.f32.gmra.mxu0 %v663
        %v708 = vpop.f32.mrf.mxu0
        %v709 = vadd.f32 0.0, %v708
        %710 = vmatmul.f32.gmra.mxu0 %v664
        %v711 = vpop.f32.mrf.mxu0
        %v712 = vadd.f32 0.0, %v711
        %713 = vmatmul.f32.gmra.mxu0 %v665
        %v714 = vpop.f32.mrf.mxu0
        %v715 = vadd.f32 0.0, %v714
        %716 = vmatmul.f32.gmra.mxu0 %v666
        %v717 = vpop.f32.mrf.mxu0
        %v718 = vadd.f32 0.0, %v717
        %719 = vmatmul.f32.gmra.mxu0 %v667
        %v720 = vpop.f32.mrf.mxu0
        %v721 = vadd.f32 0.0, %v720
        %722 = vmatmul.f32.gmra.mxu0 %v668
        %v723 = vpop.f32.mrf.mxu0
        %v724 = vadd.f32 0.0, %v723
        %725 = vmatmul.f32.gmra.mxu0 %v669
        %v726 = vpop.f32.mrf.mxu0
        %v727 = vadd.f32 0.0, %v726
        %728 = vmatmul.f32.gmra.mxu0 %v670
        %v729 = vpop.f32.mrf.mxu0
        %v730 = vadd.f32 0.0, %v729
        %731 = vmatmul.f32.gmra.mxu0 %v671
        %v732 = vpop.f32.mrf.mxu0
        %v733 = vadd.f32 0.0, %v732
        %734 = vmatmul.f32.gmra.mxu0 %v672
        %v735 = vpop.f32.mrf.mxu0
        %v736 = vadd.f32 0.0, %v735
        %737 = vdwg.mxu0
        %v738 = vadd.f32 %v589, %v691
        %v739 = vadd.f32 %v590, %v694
        %v740 = vadd.f32 %v591, %v697
        %v741 = vadd.f32 %v592, %v700
        %v742 = vadd.f32 %v593, %v703
        %v743 = vadd.f32 %v594, %v706
        %v744 = vadd.f32 %v595, %v709
        %v745 = vadd.f32 %v596, %v712
        %v746 = vadd.f32 %v597, %v715
        %v747 = vadd.f32 %v598, %v718
        %v748 = vadd.f32 %v599, %v721
        %v749 = vadd.f32 %v600, %v724
        %v750 = vadd.f32 %v601, %v727
        %v751 = vadd.f32 %v602, %v730
        %v752 = vadd.f32 %v603, %v733
        %v753 = vadd.f32 %v604, %v736
        %754 = vrot.lane.b32.xlu0 %v226, 127
        %v755 = vpop.permute.xlu0 %754
        %756 = vrot.lane.b32.xlu0 %v227, 127
        %v757 = vpop.permute.xlu0 %756
        %758 = vrot.lane.b32.xlu0 %v228, 127
        %v759 = vpop.permute.xlu0 %758
        %760 = vrot.lane.b32.xlu0 %v229, 127
        %v761 = vpop.permute.xlu0 %760
        %762 = vrot.lane.b32.xlu0 %v230, 127
        %v763 = vpop.permute.xlu0 %762
        %764 = vrot.lane.b32.xlu0 %v231, 127
        %v765 = vpop.permute.xlu0 %764
        %766 = vrot.lane.b32.xlu0 %v232, 127
        %v767 = vpop.permute.xlu0 %766
        %768 = vrot.lane.b32.xlu0 %v233, 127
        %v769 = vpop.permute.xlu0 %768
        %770 = vrot.lane.b32.xlu0 %v234, 127
        %v771 = vpop.permute.xlu0 %770
        %772 = vrot.lane.b32.xlu0 %v235, 127
        %v773 = vpop.permute.xlu0 %772
        %774 = vrot.lane.b32.xlu0 %v236, 127
        %v775 = vpop.permute.xlu0 %774
        %776 = vrot.lane.b32.xlu0 %v237, 127
        %v777 = vpop.permute.xlu0 %776
        %778 = vrot.lane.b32.xlu0 %v238, 127
        %v779 = vpop.permute.xlu0 %778
        %780 = vrot.lane.b32.xlu0 %v239, 127
        %v781 = vpop.permute.xlu0 %780
        %782 = vrot.lane.b32.xlu0 %v240, 127
        %v783 = vpop.permute.xlu0 %782
        %784 = vrot.lane.b32.xlu0 %v241, 127
        %v785 = vpop.permute.xlu0 %784
        %vm786 = vcmp.lt.s32.totalorder %v225, 127
        %v787 = vsel %vm786, 1, 0
        %vm788 = vcmp.eq.s32.totalorder %v787, 1
        %v789 = vsel %vm788, %v755, 0.0
        %v790 = vsel %vm788, %v757, 0.0
        %v791 = vsel %vm788, %v759, 0.0
        %v792 = vsel %vm788, %v761, 0.0
        %v793 = vsel %vm788, %v763, 0.0
        %v794 = vsel %vm788, %v765, 0.0
        %v795 = vsel %vm788, %v767, 0.0
        %v796 = vsel %vm788, %v769, 0.0
        %v797 = vsel %vm788, %v771, 0.0
        %v798 = vsel %vm788, %v773, 0.0
        %v799 = vsel %vm788, %v775, 0.0
        %v800 = vsel %vm788, %v777, 0.0
        %v801 = vsel %vm788, %v779, 0.0
        %v802 = vsel %vm788, %v781, 0.0
        %v803 = vsel %vm788, %v783, 0.0
        %v804 = vsel %vm788, %v785, 0.0
        %s805 = scalar_lea.vmem [#allocation5], 512
        %v806 = vld [vmem:[%s805] sm:$0xff]
        %v807 = vld [vmem:[%s805 + $0x8] sm:$0xff]
        %v808 = vld [vmem:[%s805 + $0x10] sm:$0xff]
        %v809 = vld [vmem:[%s805 + $0x18] sm:$0xff]
        %v810 = vld [vmem:[%s805 + $0x20] sm:$0xff]
        %v811 = vld [vmem:[%s805 + $0x28] sm:$0xff]
        %v812 = vld [vmem:[%s805 + $0x30] sm:$0xff]
        %v813 = vld [vmem:[%s805 + $0x38] sm:$0xff]
        %v814 = vld [vmem:[%s805 + $0x40] sm:$0xff]
        %v815 = vld [vmem:[%s805 + $0x48] sm:$0xff]
        %v816 = vld [vmem:[%s805 + $0x50] sm:$0xff]
        %v817 = vld [vmem:[%s805 + $0x58] sm:$0xff]
        %v818 = vld [vmem:[%s805 + $0x60] sm:$0xff]
        %v819 = vld [vmem:[%s805 + $0x68] sm:$0xff]
        %v820 = vld [vmem:[%s805 + $0x70] sm:$0xff]
        %v821 = vld [vmem:[%s805 + $0x78] sm:$0xff]
        %822 = vmatpush.msra.mxu0 %v804
        %823 = vmatpush.msra.mxu0 %v803
        %824 = vmatpush.msra.mxu0 %v802
        %825 = vmatpush.msra.mxu0 %v801
        %826 = vmatpush.msra.mxu0 %v800
        %827 = vmatpush.msra.mxu0 %v799
        %828 = vmatpush.msra.mxu0 %v798
        %829 = vmatpush.msra.mxu0 %v797
        %830 = vmatpush.msra.mxu0 %v796
        %831 = vmatpush.msra.mxu0 %v795
        %832 = vmatpush.msra.mxu0 %v794
        %833 = vmatpush.msra.mxu0 %v793
        %834 = vmatpush.msra.mxu0 %v792
        %835 = vmatpush.msra.mxu0 %v791
        %836 = vmatpush.msra.mxu0 %v790
        %837 = vmatpush.msra.mxu0 %v789
        %838 = vmatmul.f32.gmra.mxu0 %v806
        %v839 = vpop.f32.mrf.mxu0
        %v840 = vadd.f32 0.0, %v839
        %841 = vmatmul.f32.gmra.mxu0 %v807
        %v842 = vpop.f32.mrf.mxu0
        %v843 = vadd.f32 0.0, %v842
        %844 = vmatmul.f32.gmra.mxu0 %v808
        %v845 = vpop.f32.mrf.mxu0
        %v846 = vadd.f32 0.0, %v845
        %847 = vmatmul.f32.gmra.mxu0 %v809
        %v848 = vpop.f32.mrf.mxu0
        %v849 = vadd.f32 0.0, %v848
        %850 = vmatmul.f32.gmra.mxu0 %v810
        %v851 = vpop.f32.mrf.mxu0
        %v852 = vadd.f32 0.0, %v851
        %853 = vmatmul.f32.gmra.mxu0 %v811
        %v854 = vpop.f32.mrf.mxu0
        %v855 = vadd.f32 0.0, %v854
        %856 = vmatmul.f32.gmra.mxu0 %v812
        %v857 = vpop.f32.mrf.mxu0
        %v858 = vadd.f32 0.0, %v857
        %859 = vmatmul.f32.gmra.mxu0 %v813
        %v860 = vpop.f32.mrf.mxu0
        %v861 = vadd.f32 0.0, %v860
        %862 = vmatmul.f32.gmra.mxu0 %v814
        %v863 = vpop.f32.mrf.mxu0
        %v864 = vadd.f32 0.0, %v863
        %865 = vmatmul.f32.gmra.mxu0 %v815
        %v866 = vpop.f32.mrf.mxu0
        %v867 = vadd.f32 0.0, %v866
        %868 = vmatmul.f32.gmra.mxu0 %v816
        %v869 = vpop.f32.mrf.mxu0
        %v870 = vadd.f32 0.0, %v869
        %871 = vmatmul.f32.gmra.mxu0 %v817
        %v872 = vpop.f32.mrf.mxu0
        %v873 = vadd.f32 0.0, %v872
        %874 = vmatmul.f32.gmra.mxu0 %v818
        %v875 = vpop.f32.mrf.mxu0
        %v876 = vadd.f32 0.0, %v875
        %877 = vmatmul.f32.gmra.mxu0 %v819
        %v878 = vpop.f32.mrf.mxu0
        %v879 = vadd.f32 0.0, %v878
        %880 = vmatmul.f32.gmra.mxu0 %v820
        %v881 = vpop.f32.mrf.mxu0
        %v882 = vadd.f32 0.0, %v881
        %883 = vmatmul.f32.gmra.mxu0 %v821
        %v884 = vpop.f32.mrf.mxu0
        %v885 = vadd.f32 0.0, %v884
        %886 = vdwg.mxu0
        %v887 = vadd.f32 %v738, %v840
        %v888 = vadd.f32 %v739, %v843
        %v889 = vadd.f32 %v740, %v846
        %v890 = vadd.f32 %v741, %v849
        %v891 = vadd.f32 %v742, %v852
        %v892 = vadd.f32 %v743, %v855
        %v893 = vadd.f32 %v744, %v858
        %v894 = vadd.f32 %v745, %v861
        %v895 = vadd.f32 %v746, %v864
        %v896 = vadd.f32 %v747, %v867
        %v897 = vadd.f32 %v748, %v870
        %v898 = vadd.f32 %v749, %v873
        %v899 = vadd.f32 %v750, %v876
        %v900 = vadd.f32 %v751, %v879
        %v901 = vadd.f32 %v752, %v882
        %v902 = vadd.f32 %v753, %v885
        %903 = vrot.lane.b32.xlu0 %v226, 126
        %v904 = vpop.permute.xlu0 %903
        %905 = vrot.lane.b32.xlu0 %v227, 126
        %v906 = vpop.permute.xlu0 %905
        %907 = vrot.lane.b32.xlu0 %v228, 126
        %v908 = vpop.permute.xlu0 %907
        %909 = vrot.lane.b32.xlu0 %v229, 126
        %v910 = vpop.permute.xlu0 %909
        %911 = vrot.lane.b32.xlu0 %v230, 126
        %v912 = vpop.permute.xlu0 %911
        %913 = vrot.lane.b32.xlu0 %v231, 126
        %v914 = vpop.permute.xlu0 %913
        %915 = vrot.lane.b32.xlu0 %v232, 126
        %v916 = vpop.permute.xlu0 %915
        %917 = vrot.lane.b32.xlu0 %v233, 126
        %v918 = vpop.permute.xlu0 %917
        %919 = vrot.lane.b32.xlu0 %v234, 126
        %v920 = vpop.permute.xlu0 %919
        %921 = vrot.lane.b32.xlu0 %v235, 126
        %v922 = vpop.permute.xlu0 %921
        %923 = vrot.lane.b32.xlu0 %v236, 126
        %v924 = vpop.permute.xlu0 %923
        %925 = vrot.lane.b32.xlu0 %v237, 126
        %v926 = vpop.permute.xlu0 %925
        %927 = vrot.lane.b32.xlu0 %v238, 126
        %v928 = vpop.permute.xlu0 %927
        %929 = vrot.lane.b32.xlu0 %v239, 126
        %v930 = vpop.permute.xlu0 %929
        %931 = vrot.lane.b32.xlu0 %v240, 126
        %v932 = vpop.permute.xlu0 %931
        %933 = vrot.lane.b32.xlu0 %v241, 126
        %v934 = vpop.permute.xlu0 %933
        %vm935 = vcmp.lt.s32.totalorder %v225, 126
        %v936 = vsel %vm935, 1, 0
        %vm937 = vcmp.eq.s32.totalorder %v936, 1
        %v938 = vsel %vm937, %v904, 0.0
        %v939 = vsel %vm937, %v906, 0.0
        %v940 = vsel %vm937, %v908, 0.0
        %v941 = vsel %vm937, %v910, 0.0
        %v942 = vsel %vm937, %v912, 0.0
        %v943 = vsel %vm937, %v914, 0.0
        %v944 = vsel %vm937, %v916, 0.0
        %v945 = vsel %vm937, %v918, 0.0
        %v946 = vsel %vm937, %v920, 0.0
        %v947 = vsel %vm937, %v922, 0.0
        %v948 = vsel %vm937, %v924, 0.0
        %v949 = vsel %vm937, %v926, 0.0
        %v950 = vsel %vm937, %v928, 0.0
        %v951 = vsel %vm937, %v930, 0.0
        %v952 = vsel %vm937, %v932, 0.0
        %v953 = vsel %vm937, %v934, 0.0
        %s954 = scalar_lea.vmem [#allocation5], 640
        %v955 = vld [vmem:[%s954] sm:$0xff]
        %v956 = vld [vmem:[%s954 + $0x8] sm:$0xff]
        %v957 = vld [vmem:[%s954 + $0x10] sm:$0xff]
        %v958 = vld [vmem:[%s954 + $0x18] sm:$0xff]
        %v959 = vld [vmem:[%s954 + $0x20] sm:$0xff]
        %v960 = vld [vmem:[%s954 + $0x28] sm:$0xff]
        %v961 = vld [vmem:[%s954 + $0x30] sm:$0xff]
        %v962 = vld [vmem:[%s954 + $0x38] sm:$0xff]
        %v963 = vld [vmem:[%s954 + $0x40] sm:$0xff]
        %v964 = vld [vmem:[%s954 + $0x48] sm:$0xff]
        %v965 = vld [vmem:[%s954 + $0x50] sm:$0xff]
        %v966 = vld [vmem:[%s954 + $0x58] sm:$0xff]
        %v967 = vld [vmem:[%s954 + $0x60] sm:$0xff]
        %v968 = vld [vmem:[%s954 + $0x68] sm:$0xff]
        %v969 = vld [vmem:[%s954 + $0x70] sm:$0xff]
        %v970 = vld [vmem:[%s954 + $0x78] sm:$0xff]
        %971 = vmatpush.msra.mxu0 %v953
        %972 = vmatpush.msra.mxu0 %v952
        %973 = vmatpush.msra.mxu0 %v951
        %974 = vmatpush.msra.mxu0 %v950
        %975 = vmatpush.msra.mxu0 %v949
        %976 = vmatpush.msra.mxu0 %v948
        %977 = vmatpush.msra.mxu0 %v947
        %978 = vmatpush.msra.mxu0 %v946
        %979 = vmatpush.msra.mxu0 %v945
        %980 = vmatpush.msra.mxu0 %v944
        %981 = vmatpush.msra.mxu0 %v943
        %982 = vmatpush.msra.mxu0 %v942
        %983 = vmatpush.msra.mxu0 %v941
        %984 = vmatpush.msra.mxu0 %v940
        %985 = vmatpush.msra.mxu0 %v939
        %986 = vmatpush.msra.mxu0 %v938
        %987 = vmatmul.f32.gmra.mxu0 %v955
        %v988 = vpop.f32.mrf.mxu0
        %v989 = vadd.f32 0.0, %v988
        %990 = vmatmul.f32.gmra.mxu0 %v956
        %v991 = vpop.f32.mrf.mxu0
        %v992 = vadd.f32 0.0, %v991
        %993 = vmatmul.f32.gmra.mxu0 %v957
        %v994 = vpop.f32.mrf.mxu0
        %v995 = vadd.f32 0.0, %v994
        %996 = vmatmul.f32.gmra.mxu0 %v958
        %v997 = vpop.f32.mrf.mxu0
        %v998 = vadd.f32 0.0, %v997
        %999 = vmatmul.f32.gmra.mxu0 %v959
        %v1000 = vpop.f32.mrf.mxu0
        %v1001 = vadd.f32 0.0, %v1000
        %1002 = vmatmul.f32.gmra.mxu0 %v960
        %v1003 = vpop.f32.mrf.mxu0
        %v1004 = vadd.f32 0.0, %v1003
        %1005 = vmatmul.f32.gmra.mxu0 %v961
        %v1006 = vpop.f32.mrf.mxu0
        %v1007 = vadd.f32 0.0, %v1006
        %1008 = vmatmul.f32.gmra.mxu0 %v962
        %v1009 = vpop.f32.mrf.mxu0
        %v1010 = vadd.f32 0.0, %v1009
        %1011 = vmatmul.f32.gmra.mxu0 %v963
        %v1012 = vpop.f32.mrf.mxu0
        %v1013 = vadd.f32 0.0, %v1012
        %1014 = vmatmul.f32.gmra.mxu0 %v964
        %v1015 = vpop.f32.mrf.mxu0
        %v1016 = vadd.f32 0.0, %v1015
        %1017 = vmatmul.f32.gmra.mxu0 %v965
        %v1018 = vpop.f32.mrf.mxu0
        %v1019 = vadd.f32 0.0, %v1018
        %1020 = vmatmul.f32.gmra.mxu0 %v966
        %v1021 = vpop.f32.mrf.mxu0
        %v1022 = vadd.f32 0.0, %v1021
        %1023 = vmatmul.f32.gmra.mxu0 %v967
        %v1024 = vpop.f32.mrf.mxu0
        %v1025 = vadd.f32 0.0, %v1024
        %1026 = vmatmul.f32.gmra.mxu0 %v968
        %v1027 = vpop.f32.mrf.mxu0
        %v1028 = vadd.f32 0.0, %v1027
        %1029 = vmatmul.f32.gmra.mxu0 %v969
        %v1030 = vpop.f32.mrf.mxu0
        %v1031 = vadd.f32 0.0, %v1030
        %1032 = vmatmul.f32.gmra.mxu0 %v970
        %v1033 = vpop.f32.mrf.mxu0
        %v1034 = vadd.f32 0.0, %v1033
        %1035 = vdwg.mxu0
        %v1036 = vadd.f32 %v887, %v989
        %v1037 = vadd.f32 %v888, %v992
        %v1038 = vadd.f32 %v889, %v995
        %v1039 = vadd.f32 %v890, %v998
        %v1040 = vadd.f32 %v891, %v1001
        %v1041 = vadd.f32 %v892, %v1004
        %v1042 = vadd.f32 %v893, %v1007
        %v1043 = vadd.f32 %v894, %v1010
        %v1044 = vadd.f32 %v895, %v1013
        %v1045 = vadd.f32 %v896, %v1016
        %v1046 = vadd.f32 %v897, %v1019
        %v1047 = vadd.f32 %v898, %v1022
        %v1048 = vadd.f32 %v899, %v1025
        %v1049 = vadd.f32 %v900, %v1028
        %v1050 = vadd.f32 %v901, %v1031
        %v1051 = vadd.f32 %v902, %v1034
        %1052 = vrot.lane.b32.xlu0 %v226, 125
        %v1053 = vpop.permute.xlu0 %1052
        %1054 = vrot.lane.b32.xlu0 %v227, 125
        %v1055 = vpop.permute.xlu0 %1054
        %1056 = vrot.lane.b32.xlu0 %v228, 125
        %v1057 = vpop.permute.xlu0 %1056
        %1058 = vrot.lane.b32.xlu0 %v229, 125
        %v1059 = vpop.permute.xlu0 %1058
        %1060 = vrot.lane.b32.xlu0 %v230, 125
        %v1061 = vpop.permute.xlu0 %1060
        %1062 = vrot.lane.b32.xlu0 %v231, 125
        %v1063 = vpop.permute.xlu0 %1062
        %1064 = vrot.lane.b32.xlu0 %v232, 125
        %v1065 = vpop.permute.xlu0 %1064
        %1066 = vrot.lane.b32.xlu0 %v233, 125
        %v1067 = vpop.permute.xlu0 %1066
        %1068 = vrot.lane.b32.xlu0 %v234, 125
        %v1069 = vpop.permute.xlu0 %1068
        %1070 = vrot.lane.b32.xlu0 %v235, 125
        %v1071 = vpop.permute.xlu0 %1070
        %1072 = vrot.lane.b32.xlu0 %v236, 125
        %v1073 = vpop.permute.xlu0 %1072
        %1074 = vrot.lane.b32.xlu0 %v237, 125
        %v1075 = vpop.permute.xlu0 %1074
        %1076 = vrot.lane.b32.xlu0 %v238, 125
        %v1077 = vpop.permute.xlu0 %1076
        %1078 = vrot.lane.b32.xlu0 %v239, 125
        %v1079 = vpop.permute.xlu0 %1078
        %1080 = vrot.lane.b32.xlu0 %v240, 125
        %v1081 = vpop.permute.xlu0 %1080
        %1082 = vrot.lane.b32.xlu0 %v241, 125
        %v1083 = vpop.permute.xlu0 %1082
        %vm1084 = vcmp.lt.s32.totalorder %v225, 125
        %v1085 = vsel %vm1084, 1, 0
        %vm1086 = vcmp.eq.s32.totalorder %v1085, 1
        %v1087 = vsel %vm1086, %v1053, 0.0
        %v1088 = vsel %vm1086, %v1055, 0.0
        %v1089 = vsel %vm1086, %v1057, 0.0
        %v1090 = vsel %vm1086, %v1059, 0.0
        %v1091 = vsel %vm1086, %v1061, 0.0
        %v1092 = vsel %vm1086, %v1063, 0.0
        %v1093 = vsel %vm1086, %v1065, 0.0
        %v1094 = vsel %vm1086, %v1067, 0.0
        %v1095 = vsel %vm1086, %v1069, 0.0
        %v1096 = vsel %vm1086, %v1071, 0.0
        %v1097 = vsel %vm1086, %v1073, 0.0
        %v1098 = vsel %vm1086, %v1075, 0.0
        %v1099 = vsel %vm1086, %v1077, 0.0
        %v1100 = vsel %vm1086, %v1079, 0.0
        %v1101 = vsel %vm1086, %v1081, 0.0
        %v1102 = vsel %vm1086, %v1083, 0.0
        %s1103 = scalar_lea.vmem [#allocation5], 768
        %v1104 = vld [vmem:[%s1103] sm:$0xff]
        %v1105 = vld [vmem:[%s1103 + $0x8] sm:$0xff]
        %v1106 = vld [vmem:[%s1103 + $0x10] sm:$0xff]
        %v1107 = vld [vmem:[%s1103 + $0x18] sm:$0xff]
        %v1108 = vld [vmem:[%s1103 + $0x20] sm:$0xff]
        %v1109 = vld [vmem:[%s1103 + $0x28] sm:$0xff]
        %v1110 = vld [vmem:[%s1103 + $0x30] sm:$0xff]
        %v1111 = vld [vmem:[%s1103 + $0x38] sm:$0xff]
        %v1112 = vld [vmem:[%s1103 + $0x40] sm:$0xff]
        %v1113 = vld [vmem:[%s1103 + $0x48] sm:$0xff]
        %v1114 = vld [vmem:[%s1103 + $0x50] sm:$0xff]
        %v1115 = vld [vmem:[%s1103 + $0x58] sm:$0xff]
        %v1116 = vld [vmem:[%s1103 + $0x60] sm:$0xff]
        %v1117 = vld [vmem:[%s1103 + $0x68] sm:$0xff]
        %v1118 = vld [vmem:[%s1103 + $0x70] sm:$0xff]
        %v1119 = vld [vmem:[%s1103 + $0x78] sm:$0xff]
        %1120 = vmatpush.msra.mxu0 %v1102
        %1121 = vmatpush.msra.mxu0 %v1101
        %1122 = vmatpush.msra.mxu0 %v1100
        %1123 = vmatpush.msra.mxu0 %v1099
        %1124 = vmatpush.msra.mxu0 %v1098
        %1125 = vmatpush.msra.mxu0 %v1097
        %1126 = vmatpush.msra.mxu0 %v1096
        %1127 = vmatpush.msra.mxu0 %v1095
        %1128 = vmatpush.msra.mxu0 %v1094
        %1129 = vmatpush.msra.mxu0 %v1093
        %1130 = vmatpush.msra.mxu0 %v1092
        %1131 = vmatpush.msra.mxu0 %v1091
        %1132 = vmatpush.msra.mxu0 %v1090
        %1133 = vmatpush.msra.mxu0 %v1089
        %1134 = vmatpush.msra.mxu0 %v1088
        %1135 = vmatpush.msra.mxu0 %v1087
        %1136 = vmatmul.f32.gmra.mxu0 %v1104
        %v1137 = vpop.f32.mrf.mxu0
        %v1138 = vadd.f32 0.0, %v1137
        %1139 = vmatmul.f32.gmra.mxu0 %v1105
        %v1140 = vpop.f32.mrf.mxu0
        %v1141 = vadd.f32 0.0, %v1140
        %1142 = vmatmul.f32.gmra.mxu0 %v1106
        %v1143 = vpop.f32.mrf.mxu0
        %v1144 = vadd.f32 0.0, %v1143
        %1145 = vmatmul.f32.gmra.mxu0 %v1107
        %v1146 = vpop.f32.mrf.mxu0
        %v1147 = vadd.f32 0.0, %v1146
        %1148 = vmatmul.f32.gmra.mxu0 %v1108
        %v1149 = vpop.f32.mrf.mxu0
        %v1150 = vadd.f32 0.0, %v1149
        %1151 = vmatmul.f32.gmra.mxu0 %v1109
        %v1152 = vpop.f32.mrf.mxu0
        %v1153 = vadd.f32 0.0, %v1152
        %1154 = vmatmul.f32.gmra.mxu0 %v1110
        %v1155 = vpop.f32.mrf.mxu0
        %v1156 = vadd.f32 0.0, %v1155
        %1157 = vmatmul.f32.gmra.mxu0 %v1111
        %v1158 = vpop.f32.mrf.mxu0
        %v1159 = vadd.f32 0.0, %v1158
        %1160 = vmatmul.f32.gmra.mxu0 %v1112
        %v1161 = vpop.f32.mrf.mxu0
        %v1162 = vadd.f32 0.0, %v1161
        %1163 = vmatmul.f32.gmra.mxu0 %v1113
        %v1164 = vpop.f32.mrf.mxu0
        %v1165 = vadd.f32 0.0, %v1164
        %1166 = vmatmul.f32.gmra.mxu0 %v1114
        %v1167 = vpop.f32.mrf.mxu0
        %v1168 = vadd.f32 0.0, %v1167
        %1169 = vmatmul.f32.gmra.mxu0 %v1115
        %v1170 = vpop.f32.mrf.mxu0
        %v1171 = vadd.f32 0.0, %v1170
        %1172 = vmatmul.f32.gmra.mxu0 %v1116
        %v1173 = vpop.f32.mrf.mxu0
        %v1174 = vadd.f32 0.0, %v1173
        %1175 = vmatmul.f32.gmra.mxu0 %v1117
        %v1176 = vpop.f32.mrf.mxu0
        %v1177 = vadd.f32 0.0, %v1176
        %1178 = vmatmul.f32.gmra.mxu0 %v1118
        %v1179 = vpop.f32.mrf.mxu0
        %v1180 = vadd.f32 0.0, %v1179
        %1181 = vmatmul.f32.gmra.mxu0 %v1119
        %v1182 = vpop.f32.mrf.mxu0
        %v1183 = vadd.f32 0.0, %v1182
        %1184 = vdwg.mxu0
        %v1185 = vadd.f32 %v1036, %v1138
        %v1186 = vadd.f32 %v1037, %v1141
        %v1187 = vadd.f32 %v1038, %v1144
        %v1188 = vadd.f32 %v1039, %v1147
        %v1189 = vadd.f32 %v1040, %v1150
        %v1190 = vadd.f32 %v1041, %v1153
        %v1191 = vadd.f32 %v1042, %v1156
        %v1192 = vadd.f32 %v1043, %v1159
        %v1193 = vadd.f32 %v1044, %v1162
        %v1194 = vadd.f32 %v1045, %v1165
        %v1195 = vadd.f32 %v1046, %v1168
        %v1196 = vadd.f32 %v1047, %v1171
        %v1197 = vadd.f32 %v1048, %v1174
        %v1198 = vadd.f32 %v1049, %v1177
        %v1199 = vadd.f32 %v1050, %v1180
        %v1200 = vadd.f32 %v1051, %v1183
        %1202 = vset.pattern.permute.xlu0 0
        %1203 = vperm.xlu0 %1202, %v208
        %v1204 = vpop.permute.xlu0 %1203
        %1207 = vset.pattern.permute.xlu0 0
        %1208 = vperm.xlu0 %1207, %v209
        %v1209 = vpop.permute.xlu0 %1208
        %1212 = vset.pattern.permute.xlu0 0
        %1213 = vperm.xlu0 %1212, %v210
        %v1214 = vpop.permute.xlu0 %1213
        %1217 = vset.pattern.permute.xlu0 0
        %1218 = vperm.xlu0 %1217, %v211
        %v1219 = vpop.permute.xlu0 %1218
        %1222 = vset.pattern.permute.xlu0 0
        %1223 = vperm.xlu0 %1222, %v212
        %v1224 = vpop.permute.xlu0 %1223
        %1227 = vset.pattern.permute.xlu0 0
        %1228 = vperm.xlu0 %1227, %v213
        %v1229 = vpop.permute.xlu0 %1228
        %1232 = vset.pattern.permute.xlu0 0
        %1233 = vperm.xlu0 %1232, %v214
        %v1234 = vpop.permute.xlu0 %1233
        %1237 = vset.pattern.permute.xlu0 0
        %1238 = vperm.xlu0 %1237, %v215
        %v1239 = vpop.permute.xlu0 %1238
        %1242 = vset.pattern.permute.xlu0 0
        %1243 = vperm.xlu0 %1242, %v216
        %v1244 = vpop.permute.xlu0 %1243
        %1247 = vset.pattern.permute.xlu0 0
        %1248 = vperm.xlu0 %1247, %v217
        %v1249 = vpop.permute.xlu0 %1248
        %1252 = vset.pattern.permute.xlu0 0
        %1253 = vperm.xlu0 %1252, %v218
        %v1254 = vpop.permute.xlu0 %1253
        %1257 = vset.pattern.permute.xlu0 0
        %1258 = vperm.xlu0 %1257, %v219
        %v1259 = vpop.permute.xlu0 %1258
        %1262 = vset.pattern.permute.xlu0 0
        %1263 = vperm.xlu0 %1262, %v220
        %v1264 = vpop.permute.xlu0 %1263
        %1267 = vset.pattern.permute.xlu0 0
        %1268 = vperm.xlu0 %1267, %v221
        %v1269 = vpop.permute.xlu0 %1268
        %1272 = vset.pattern.permute.xlu0 0
        %1273 = vperm.xlu0 %1272, %v222
        %v1274 = vpop.permute.xlu0 %1273
        %1277 = vset.pattern.permute.xlu0 0
        %1278 = vperm.xlu0 %1277, %v223
        %v1279 = vpop.permute.xlu0 %1278
        %v1281 = vadd.f32 %v1185, %v1204
        %v1282 = vadd.f32 %v1186, %v1209
        %v1283 = vadd.f32 %v1187, %v1214
        %v1284 = vadd.f32 %v1188, %v1219
        %v1285 = vadd.f32 %v1189, %v1224
        %v1286 = vadd.f32 %v1190, %v1229
        %v1287 = vadd.f32 %v1191, %v1234
        %v1288 = vadd.f32 %v1192, %v1239
        %v1289 = vadd.f32 %v1193, %v1244
        %v1290 = vadd.f32 %v1194, %v1249
        %v1291 = vadd.f32 %v1195, %v1254
        %v1292 = vadd.f32 %v1196, %v1259
        %v1293 = vadd.f32 %v1197, %v1264
        %v1294 = vadd.f32 %v1198, %v1269
        %v1295 = vadd.f32 %v1199, %v1274
        %v1296 = vadd.f32 %v1200, %v1279
        %1297 = vst [vmem:[%s207] sm:$0xff] %v1281
        %1298 = vst [vmem:[%s207 + $0x8] sm:$0xff] %v1282
        %1299 = vst [vmem:[%s207 + $0x10] sm:$0xff] %v1283
        %1300 = vst [vmem:[%s207 + $0x18] sm:$0xff] %v1284
        %1301 = vst [vmem:[%s207 + $0x20] sm:$0xff] %v1285
        %1302 = vst [vmem:[%s207 + $0x28] sm:$0xff] %v1286
        %1303 = vst [vmem:[%s207 + $0x30] sm:$0xff] %v1287
        %1304 = vst [vmem:[%s207 + $0x38] sm:$0xff] %v1288
        %1305 = vst [vmem:[%s207 + $0x40] sm:$0xff] %v1289
        %1306 = vst [vmem:[%s207 + $0x48] sm:$0xff] %v1290
        %1307 = vst [vmem:[%s207 + $0x50] sm:$0xff] %v1291
        %1308 = vst [vmem:[%s207 + $0x58] sm:$0xff] %v1292
        %1309 = vst [vmem:[%s207 + $0x60] sm:$0xff] %v1293
        %1310 = vst [vmem:[%s207 + $0x68] sm:$0xff] %v1294
        %1311 = vst [vmem:[%s207 + $0x70] sm:$0xff] %v1295
        %1312 = vst [vmem:[%s207 + $0x78] sm:$0xff] %v1296
        %s1313 = sand.u32 %s97, 1
        %s1314 = scalar_lea.sflag [#allocation4], %s1313
        %s1315 = sand.u32 %s97, 1
        %s1316 = smul.addr %s1315, 128
        %s1317 = scalar_lea.vmem [#allocation7], %s1316
        // Predicated region
        $region41: #{tpu_custom_call.1} parent=31 // pred_check
          %p1318 = pneg %p107
        $region42: #{tpu_custom_call.1} parent=31 // pred_check_branch
          %1320 = sbr.rel (%p1318) target = $region44
        $region43: #{tpu_custom_call.1} parent=31 // pred_region
          %1322 = vsyncadd %s1314, 0
          %s1323 = smul.addr %s21, 16
          %s1324 = smul.addr %s1323, 8
          %s1325 = scalar_lea.hbm %s3, %s1324
          %s1326 = sshll.u32 %s1317, 4
          %s1327 = int_to_ptr.vmem [resolvable:$true] %s1326
          %s1328 = sshll.u32 %s1325, 4
          %s1329 = int_to_ptr.hbm [resolvable:$true] %s1328
          %1334 = dma.vmem_to_hbm [thread:$0]  %s1327, 2048, %s1329, %s1314, 128, 128, 8
        $region44: #{tpu_custom_call.1} parent=31 // pred_fallthru
          _
      $region32: #{tpu_custom_call.1} parent=5 // pred_fallthru
        _
      %p1335 = scmp.le.s32.totalorder 2, %s16
      // Predicated region
      $region45: #{tpu_custom_call.1} parent=5 // pred_check
        %p1336 = pneg %p1335
      $region46: #{tpu_custom_call.1} parent=5 // pred_check_branch
        %1338 = sbr.rel (%p1336) target = $region48
      $region47: #{tpu_custom_call.1} parent=5 // pred_region
        %s1339 = ssub.s32 %s16, 2
        // Predicated region
        $region49: #{tpu_custom_call.1} parent=47 // pred_check
          %p1340 = pneg %p113
        $region50: #{tpu_custom_call.1} parent=47 // pred_check_branch
          %1342 = sbr.rel (%p1340) target = $region52
        $region51: #{tpu_custom_call.1} parent=47 // pred_region
          %s1343 = sand.u32 %s98, 1
          %s1344 = scalar_lea.sflag [#allocation4], %s1343
          %s1345 = sand.u32 %s98, 1
          %s1346 = smul.addr %s1345, 128
          %s1347 = scalar_lea.vmem [#allocation7], %s1346
          %1349 = dma.done %s1344, 2048
        $region52: #{tpu_custom_call.1} parent=47 // pred_fallthru
          _
      $region48: #{tpu_custom_call.1} parent=5 // pred_fallthru
        _
    $region6: #{tpu_custom_call.1} parent=1 // loop_footer
      %s20 = sadd.s32 1, %s16
    $region7: #{tpu_custom_call.1} parent=1 // loop_footer_branch
      %15 = sbr.rel target = $region3
    $region8: #{tpu_custom_call.1} parent=1 // loop_exit
      _
    %1350 = vsyncpa [#allocation3], 1
    %s1351 = scalar_lea.sflag [#allocation3], 1
    %1352 = vsyncpa %s1351, 1
    %1353 = vsyncpa [#allocation6], 1
    %1354 = vsyncpa [#allocation4], 1
    %s1355 = scalar_lea.sflag [#allocation4], 1
    %1356 = vsyncpa %s1355, 1

</llo_original>
